<compile_context>
chip_gen: v6e
topology: v6e:2x2x1
jax: 0.10.0
libtpu: 0.0.40
codegen_flags: <defaults>
</compile_context>

<pallas_src>
import functools

import jax
import jax.numpy as jnp
from jax.experimental import pallas as pl
from jax.experimental.pallas import tpu as pltpu

EPS = 1e-5
NEG_SLOPE = 0.2
F_IN = 4
F_PAD = 8                  # x padded 4 -> 8 features; row 4 is the "ones" row
N_HIDDEN = 256
VMEM_LIMIT = 32 * 1024 * 1024   # safe scoped-VMEM budget on v5e / v6e / v7x
WHOLE_BATCH_MAX = 4096          # single-step path when padded batch fits in VMEM


def _round_up(n, m):
    return (n + m - 1) // m * m


# ---------------------------------------------------------------------------
# Fused two-phase kernel (tiled path).  grid = (2, num_tiles).
# ---------------------------------------------------------------------------
def _fused_kernel(x8_ref, w1t8_ref, gamma_ref, beta_ref, w2t_ref, b2_ref,
                  o_ref, s1_sc, s2_sc, scale_sc, shift_sc, *, inv_b):
    p = pl.program_id(0)
    i = pl.program_id(1)

    @pl.when(p == 0)
    def _stats():
        @pl.when(i == 0)
        def _():
            s1_sc[...] = jnp.zeros_like(s1_sc)
            s2_sc[...] = jnp.zeros_like(s2_sc)

        # h (without the Linear bias) for this tile: (256, tile_b).  Zero-padded
        # batch columns contribute nothing to the sums (w1t8 col 4 is zero), so
        # dividing by the true batch size keeps full-batch statistics exact.
        hw = jnp.dot(w1t8_ref[...], x8_ref[...],
                     preferred_element_type=jnp.float32)
        s1_sc[...] += jnp.sum(hw, axis=1, keepdims=True)          # (256, 1)
        s2_sc[...] += jnp.sum(hw * hw, axis=1, keepdims=True)     # (256, 1)

        @pl.when(i == pl.num_programs(1) - 1)
        def _():
            mean = s1_sc[...] * inv_b
            # Biased variance (PyTorch train-mode BN); single-pass E[h^2]-mean^2.
            # TODO(synk): a centered second pass (or Welford) would be safer for
            # badly uncentered / huge-magnitude activations.
            var = jnp.maximum(s2_sc[...] * inv_b - mean * mean, 0.0)
            scale = gamma_ref[...] * jax.lax.rsqrt(var + EPS)
            scale_sc[...] = scale
            # b1 cancels:  (h + b1) - mean(h + b1) == h - mean(h).
            shift_sc[...] = beta_ref[...] - mean * scale

        # Phase-0 output block is a dummy row (row p=0 of the output), discarded
        # by the wrapper; zero-fill so we never write back uninitialized VMEM.
        o_ref[...] = jnp.zeros_like(o_ref)

    @pl.when(p == 1)
    def _project():
        # Fold BN scale into the weight columns and BN shift into the extra
        # "ones" feature column (index 4): the MXU emits the normalized
        # activations directly, leaving only the LeakyReLU on the VALU.
        col = jax.lax.broadcasted_iota(jnp.int32, (N_HIDDEN, F_PAD), 1)
        w1s = (w1t8_ref[...] * scale_sc[...]
               + jnp.where(col == 4, shift_sc[...], 0.0))         # (256, 8)
        y = jnp.dot(w1s, x8_ref[...],
                    preferred_element_type=jnp.float32)           # (256, tile_b)
        a = jnp.maximum(y, NEG_SLOPE * y)                         # LeakyReLU(0.2)
        out = jnp.dot(w2t_ref[...], a,
                      preferred_element_type=jnp.float32)         # (1, tile_b)
        o_ref[...] = (out + b2_ref[0])[None]                      # lane-dense store


# ---------------------------------------------------------------------------
# Whole-batch single-step kernel (small-B path): no recompute of w1^T x.
# ---------------------------------------------------------------------------
def _whole_batch_kernel(x8_ref, w1t8_ref, gamma_ref, beta_ref, w2t_ref, b2_ref,
                        o_ref, h_sc, *, inv_b):
    h_sc[...] = jnp.dot(w1t8_ref[...], x8_ref[...],
                        preferred_element_type=jnp.float32)       # (256, Bp)
    h = h_sc[...]
    mean = jnp.sum(h, axis=1, keepdims=True) * inv_b
    var = jnp.maximum(jnp.sum(h * h, axis=1, keepdims=True) * inv_b
                      - mean * mean, 0.0)
    scale = gamma_ref[...] * jax.lax.rsqrt(var + EPS)
    shift = beta_ref[...] - mean * scale
    y = h * scale + shift                                         # folded BN (+ b1)
    a = jnp.maximum(y, NEG_SLOPE * y)                             # LeakyReLU(0.2)
    out = jnp.dot(w2t_ref[...], a, preferred_element_type=jnp.float32)
    o_ref[...] = out + b2_ref[0]                                  # (1, Bp)


def my_classifier_forward(x, params, tile_b=4096, whole_batch_max=WHOLE_BATCH_MAX):
    """x: (B, 4) float32  ->  (B, 1) float32 (train-mode BatchNorm semantics)."""
    w1, _b1, gamma, beta, w2, b2 = params   # b1 is mathematically inert (BN mean)
    B, F = x.shape
    N = w1.shape[1]
    assert F == F_IN and N == N_HIDDEN

    x = x.astype(jnp.float32)
    Bp128 = _round_up(B, 128)

    # Batch-in-lanes, feature-padded layout: (8, Bp) where rows 0..3 = x^T,
    # row 4 = 1.0 (carries the BN shift through the MXU), rows 5..7 = 0.
    def build_x8(Bp):
        xT = jnp.pad(x, ((0, Bp - B), (0, 0))).T                  # (4, Bp)
        ones = jnp.ones((1, Bp), jnp.float32)
        zeros = jnp.zeros((F_PAD - F_IN - 1, Bp), jnp.float32)
        return jnp.concatenate([xT, ones, zeros], axis=0)         # (8, Bp)

    # (256, 8): cols 0..3 = w1^T, cols 4..7 = 0 (so stats ignore the ones row).
    w1t8 = jnp.pad(jnp.transpose(w1.astype(jnp.float32)),
                   ((0, 0), (0, F_PAD - F_IN)))
    w2t = jnp.transpose(w2.astype(jnp.float32)).reshape(1, N)
    gamma_c = gamma.astype(jnp.float32).reshape(N, 1)
    beta_c = beta.astype(jnp.float32).reshape(N, 1)
    b2_s = b2.astype(jnp.float32).reshape(1)
    smem_spec = pl.BlockSpec(memory_space=pltpu.MemorySpace.SMEM)

    # ---- small batch: whole-batch single grid step --------------------------
    if Bp128 <= whole_batch_max:
        Bp = Bp128
        x8 = build_x8(Bp)
        out = pl.pallas_call(
            functools.partial(_whole_batch_kernel, inv_b=1.0 / B),
            out_shape=jax.ShapeDtypeStruct((1, Bp), jnp.float32),
            grid=(1,),
            in_specs=[pl.BlockSpec((F_PAD, Bp), lambda i: (0, 0)),
                      pl.BlockSpec((N, F_PAD), lambda i: (0, 0)),
                      pl.BlockSpec((N, 1), lambda i: (0, 0)),
                      pl.BlockSpec((N, 1), lambda i: (0, 0)),
                      pl.BlockSpec((1, N), lambda i: (0, 0)),
                      smem_spec],
            out_specs=pl.BlockSpec((1, Bp), lambda i: (0, 0)),
            scratch_shapes=[pltpu.VMEM((N, Bp), jnp.float32)],
            compiler_params=pltpu.CompilerParams(
                dimension_semantics=("arbitrary",),
                vmem_limit_bytes=VMEM_LIMIT),
        )(x8, w1t8, gamma_c, beta_c, w2t, b2_s)
        return out[:, :B].reshape(B, 1)

    # ---- large batch: single fused two-phase call ---------------------------
    tile_b = min(int(tile_b), 8192, Bp128)
    tile_b = _round_up(max(tile_b, 128), 128)
    Bp = _round_up(B, tile_b)
    num_tiles = Bp // tile_b
    x8 = build_x8(Bp)

    x_spec = pl.BlockSpec((F_PAD, tile_b), lambda p, i: (0, i))
    w1_spec = pl.BlockSpec((N, F_PAD), lambda p, i: (0, 0))       # stays resident
    col_spec = pl.BlockSpec((N, 1), lambda p, i: (0, 0))
    w2_spec = pl.BlockSpec((1, N), lambda p, i: (0, 0))

    out2 = pl.pallas_call(
        functools.partial(_fused_kernel, inv_b=1.0 / B),
        out_shape=jax.ShapeDtypeStruct((2, 1, Bp), jnp.float32),  # row 0 = dummy
        grid=(2, num_tiles),                                      # (phase, tile)
        in_specs=[x_spec, w1_spec, col_spec, col_spec, w2_spec, smem_spec],
        out_specs=pl.BlockSpec((1, 1, tile_b), lambda p, i: (p, 0, i)),
        scratch_shapes=[pltpu.VMEM((N, 1), jnp.float32),          # sum
                        pltpu.VMEM((N, 1), jnp.float32),          # sum of squares
                        pltpu.VMEM((N, 1), jnp.float32),          # folded scale
                        pltpu.VMEM((N, 1), jnp.float32)],         # folded shift
        compiler_params=pltpu.CompilerParams(
            # TODO(synk): on v7x a core-parallel split (per-core partial stats +
            # tiny cross-core reduce) would use both TensorCores; the
            # phase-coupled scratch forces sequential "arbitrary" axes here.
            dimension_semantics=("arbitrary", "arbitrary"),
            vmem_limit_bytes=VMEM_LIMIT),
    )(x8, w1t8, gamma_c, beta_c, w2t, b2_s)

    return out2[1][:, :B].reshape(B, 1)


def init_params(key, input_feature=4, neuron_num=256, output_feature=1):
    """PyTorch-default-style init for Linear / BatchNorm parameters."""
    k1, k2, k3, k4 = jax.random.split(key, 4)

    bound1 = 1.0 / jnp.sqrt(input_feature)
    w1 = jax.random.uniform(k1, (input_feature, neuron_num),
                            minval=-bound1, maxval=bound1, dtype=jnp.float32)
    b1 = jax.random.uniform(k2, (neuron_num,),
                            minval=-bound1, maxval=bound1, dtype=jnp.float32)

    gamma = jnp.ones((neuron_num,), jnp.float32)
    beta = jnp.zeros((neuron_num,), jnp.float32)

    bound2 = 1.0 / jnp.sqrt(neuron_num)
    w2 = jax.random.uniform(k3, (neuron_num, output_feature),
                            minval=-bound2, maxval=bound2, dtype=jnp.float32)
    b2 = jax.random.uniform(k4, (output_feature,),
                            minval=-bound2, maxval=bound2, dtype=jnp.float32)

    return (w1, b1, gamma, beta, w2, b2)


def reference_forward(x, params):
    """Pure-JAX reference (PyTorch train-mode semantics)."""
    w1, b1, gamma, beta, w2, b2 = params
    h = x @ w1 + b1
    mean = jnp.mean(h, axis=0, keepdims=True)
    var = jnp.mean((h - mean) ** 2, axis=0, keepdims=True)
    hn = (h - mean) * jax.lax.rsqrt(var + EPS) * gamma + beta
    a = jnp.where(hn >= 0, hn, NEG_SLOPE * hn)
    return a @ w2 + b2


if __name__ == "__main__":
    key = jax.random.PRNGKey(0)
    k_x, k_p = jax.random.split(key)

    B = 300   # deliberately NOT a multiple of the 128-lane tile
    x = jax.random.normal(k_x, (B, 4), dtype=jnp.float32)
    params = init_params(k_p)
    ref = reference_forward(x, params)

    # Path 1: whole-batch single-step kernel (default dispatch for small B).
    out1 = jax.block_until_ready(my_classifier_forward(x, params))
    assert out1.shape == (B, 1), out1.shape
    err1 = float(jnp.max(jnp.abs(out1 - ref)))
    assert err1 < 1e-3, f"whole-batch path: max abs err = {err1}"

    # Path 2: fused two-phase tiled kernel (forced; 3 batch tiles of 128).
    out2 = jax.block_until_ready(
        my_classifier_forward(x, params, tile_b=128, whole_batch_max=0))
    assert out2.shape == (B, 1), out2.shape
    err2 = float(jnp.max(jnp.abs(out2 - ref)))
    assert err2 < 1e-3, f"tiled path: max abs err = {err2}"

    print("KERNEL_OK")
</pallas_src>

<mosaic_0001>
module attributes {stable_mosaic.version = 11 : i64} {
  func.func @_whole_batch_kernel(%arg0: i32, %arg1: memref<8x384xf32, #tpu.memory_space<vmem>>, %arg2: memref<256x8xf32, #tpu.memory_space<vmem>>, %arg3: memref<256x1xf32, #tpu.memory_space<vmem>>, %arg4: memref<256x1xf32, #tpu.memory_space<vmem>>, %arg5: memref<1x256xf32, #tpu.memory_space<vmem>>, %arg6: memref<1xf32, #tpu.memory_space<smem>>, %arg7: memref<1x384xf32, #tpu.memory_space<vmem>>, %arg8: memref<256x384xf32, #tpu.memory_space<vmem>>) attributes {dimension_semantics = [#tpu.dimension_semantics<arbitrary>], iteration_bounds = array<i64: 1>, scalar_prefetch = 0 : i64, scratch_operands = 1 : i64, tpu.core_type = #tpu.core_type<tc>, window_params = [{pipeline_mode = #tpu.pipeline_mode<synchronous>, transform_indices = @transform_0, window_bounds = array<i64: 8, 384>}, {pipeline_mode = #tpu.pipeline_mode<synchronous>, transform_indices = @transform_1, window_bounds = array<i64: 256, 8>}, {pipeline_mode = #tpu.pipeline_mode<synchronous>, transform_indices = @transform_2, window_bounds = array<i64: 256, 1>}, {pipeline_mode = #tpu.pipeline_mode<synchronous>, transform_indices = @transform_3, window_bounds = array<i64: 256, 1>}, {pipeline_mode = #tpu.pipeline_mode<synchronous>, transform_indices = @transform_4, window_bounds = array<i64: 1, 256>}, {transform_indices = @transform_5, window_bounds = array<i64: 1>}, {pipeline_mode = #tpu.pipeline_mode<synchronous>, transform_indices = @transform_6, window_bounds = array<i64: 1, 384>}]} {
    %c0 = arith.constant 0 : index
    %c0_0 = arith.constant 0 : index
    %0 = vector.load %arg2[%c0, %c0_0] : memref<256x8xf32, #tpu.memory_space<vmem>>, vector<256x8xf32>
    %c0_1 = arith.constant 0 : index
    %c0_2 = arith.constant 0 : index
    %1 = vector.load %arg1[%c0_1, %c0_2] : memref<8x384xf32, #tpu.memory_space<vmem>>, vector<8x384xf32>
    %cst = arith.constant dense<0.000000e+00> : vector<256x384xf32>
    %2 = tpu.matmul %0, %1, %cst {dimension_numbers = #tpu.dot_dimension_numbers<[1], [0], [0], [1], [0, 0, 1, 1], [], []>} : vector<256x8xf32>, vector<8x384xf32>, vector<256x384xf32> -> vector<256x384xf32>
    %c0_3 = arith.constant 0 : index
    %c0_4 = arith.constant 0 : index
    %3 = vector.load %arg8[%c0_3, %c0_4] : memref<256x384xf32, #tpu.memory_space<vmem>>, vector<256x384xf32>
    tpu.vector_store %arg8[%c0_3, %c0_4], %2 {strides = array<i32>} : memref<256x384xf32, #tpu.memory_space<vmem>>, vector<256x384xf32>,
    %c0_5 = arith.constant 0 : index
    %c0_6 = arith.constant 0 : index
    %4 = vector.load %arg8[%c0_5, %c0_6] : memref<256x384xf32, #tpu.memory_space<vmem>>, vector<256x384xf32>
    %cst_7 = arith.constant dense<0.000000e+00> : vector<256xf32>
    %5 = vector.multi_reduction <add>, %4, %cst_7 [1] : vector<256x384xf32> to vector<256xf32>
    %6 = vector.shape_cast %5 : vector<256xf32> to vector<256x1xf32>
    %cst_8 = arith.constant 0.00333333341 : f32
    %7 = vector.broadcast %cst_8 : f32 to vector<256x1xf32>
    %8 = arith.mulf %6, %7 : vector<256x1xf32>
    %9 = arith.mulf %4, %4 : vector<256x384xf32>
    %cst_9 = arith.constant dense<0.000000e+00> : vector<256xf32>
    %10 = vector.multi_reduction <add>, %9, %cst_9 [1] : vector<256x384xf32> to vector<256xf32>
    %11 = vector.shape_cast %10 : vector<256xf32> to vector<256x1xf32>
    %cst_10 = arith.constant 0.00333333341 : f32
    %12 = vector.broadcast %cst_10 : f32 to vector<256x1xf32>
    %13 = arith.mulf %11, %12 : vector<256x1xf32>
    %14 = arith.mulf %8, %8 : vector<256x1xf32>
    %15 = arith.subf %13, %14 : vector<256x1xf32>
    %cst_11 = arith.constant 0.000000e+00 : f32
    %16 = vector.broadcast %cst_11 : f32 to vector<256x1xf32>
    %17 = arith.maximumf %15, %16 : vector<256x1xf32>
    %c0_12 = arith.constant 0 : index
    %c0_13 = arith.constant 0 : index
    %18 = vector.load %arg3[%c0_12, %c0_13] : memref<256x1xf32, #tpu.memory_space<vmem>>, vector<256x1xf32>
    %cst_14 = arith.constant 9.99999974E-6 : f32
    %19 = vector.broadcast %cst_14 : f32 to vector<256x1xf32>
    %20 = arith.addf %17, %19 : vector<256x1xf32>
    %21 = math.rsqrt %20 : vector<256x1xf32>
    %22 = arith.mulf %18, %21 : vector<256x1xf32>
    %c0_15 = arith.constant 0 : index
    %c0_16 = arith.constant 0 : index
    %23 = vector.load %arg4[%c0_15, %c0_16] : memref<256x1xf32, #tpu.memory_space<vmem>>, vector<256x1xf32>
    %24 = arith.mulf %8, %22 : vector<256x1xf32>
    %25 = arith.subf %23, %24 : vector<256x1xf32>
    %26 = vector.broadcast %22 : vector<256x1xf32> to vector<256x384xf32>
    %27 = arith.mulf %4, %26 : vector<256x384xf32>
    %28 = vector.broadcast %25 : vector<256x1xf32> to vector<256x384xf32>
    %29 = arith.addf %27, %28 : vector<256x384xf32>
    %cst_17 = arith.constant 2.000000e-01 : f32
    %30 = vector.broadcast %cst_17 : f32 to vector<256x384xf32>
    %31 = arith.mulf %30, %29 : vector<256x384xf32>
    %32 = arith.maximumf %29, %31 : vector<256x384xf32>
    %c0_18 = arith.constant 0 : index
    %c0_19 = arith.constant 0 : index
    %33 = vector.load %arg5[%c0_18, %c0_19] : memref<1x256xf32, #tpu.memory_space<vmem>>, vector<1x256xf32>
    %cst_20 = arith.constant dense<0.000000e+00> : vector<1x384xf32>
    %34 = tpu.matmul %33, %32, %cst_20 {dimension_numbers = #tpu.dot_dimension_numbers<[1], [0], [0], [1], [0, 0, 1, 1], [], []>} : vector<1x256xf32>, vector<256x384xf32>, vector<1x384xf32> -> vector<1x384xf32>
    %c0_21 = arith.constant 0 : index
    %35 = memref.load %arg6[%c0_21] : memref<1xf32, #tpu.memory_space<smem>>
    %36 = vector.broadcast %35 : f32 to vector<1x384xf32>
    %37 = arith.addf %34, %36 : vector<1x384xf32>
    %c0_22 = arith.constant 0 : index
    %c0_23 = arith.constant 0 : index
    %38 = vector.load %arg7[%c0_22, %c0_23] : memref<1x384xf32, #tpu.memory_space<vmem>>, vector<1x384xf32>
    tpu.vector_store %arg7[%c0_22, %c0_23], %37 {strides = array<i32>} : memref<1x384xf32, #tpu.memory_space<vmem>>, vector<1x384xf32>,
    return
  }
  func.func @transform_0(%arg0: i32) -> (i32, i32) {
    %c0_i32 = arith.constant 0 : i32
    %c0_i32_0 = arith.constant 0 : i32
    %c0_i32_1 = arith.constant 0 : i32
    return %c0_i32, %c0_i32_0 : i32, i32
  }
  func.func @transform_1(%arg0: i32) -> (i32, i32) {
    %c0_i32 = arith.constant 0 : i32
    %c0_i32_0 = arith.constant 0 : i32
    %c0_i32_1 = arith.constant 0 : i32
    return %c0_i32, %c0_i32_0 : i32, i32
  }
  func.func @transform_2(%arg0: i32) -> (i32, i32) {
    %c0_i32 = arith.constant 0 : i32
    %c0_i32_0 = arith.constant 0 : i32
    %c0_i32_1 = arith.constant 0 : i32
    return %c0_i32, %c0_i32_0 : i32, i32
  }
  func.func @transform_3(%arg0: i32) -> (i32, i32) {
    %c0_i32 = arith.constant 0 : i32
    %c0_i32_0 = arith.constant 0 : i32
    %c0_i32_1 = arith.constant 0 : i32
    return %c0_i32, %c0_i32_0 : i32, i32
  }
  func.func @transform_4(%arg0: i32) -> (i32, i32) {
    %c0_i32 = arith.constant 0 : i32
    %c0_i32_0 = arith.constant 0 : i32
    %c0_i32_1 = arith.constant 0 : i32
    return %c0_i32, %c0_i32_0 : i32, i32
  }
  func.func @transform_5(%arg0: i32) -> i32 {
    %c0_i32 = arith.constant 0 : i32
    %c0_i32_0 = arith.constant 0 : i32
    return %c0_i32 : i32
  }
  func.func @transform_6(%arg0: i32) -> (i32, i32) {
    %c0_i32 = arith.constant 0 : i32
    %c0_i32_0 = arith.constant 0 : i32
    %c0_i32_1 = arith.constant 0 : i32
    return %c0_i32, %c0_i32_0 : i32, i32
  }
}

</mosaic_0001>

<llo_original>
// kernel: tpu_custom_call.1
$region0: #{tpu_custom_call.1}
  #allocation0 [shape = 'u32[]', space=smem, size = 0x4, offset = 0x4, fixed_abs, tag = 'smem constant byte address 0x4 - core index']
  #allocation1 [shape = 'u32[144,128]{1,0:T(1,128)}', space=vmem, size = 0x12000, scoped, tag = 'internal scratch']
  #allocation2 [shape = 'f32[256,384]{1,0:T(8,128)}', space=vmem, size = 0x60000, scoped, tag = 'scratch operand']
  #allocation3 [shape = 'f32[1]{0:T(128)S(6)}', space=smem, size = 0x200, scoped, tag = 'scoped memory for tpu_custom_call.1']
  %s0 = inlined_call_operand.vmem [shape: f32[8,384], index: 0, kind: input, shape index: {}]
  %s1 = inlined_call_operand.vmem [shape: f32[256,8], index: 1, kind: input, shape index: {}]
  %s2 = inlined_call_operand.vmem [shape: f32[256,1], index: 2, kind: input, shape index: {}]
  %s3 = inlined_call_operand.vmem [shape: f32[256,1], index: 3, kind: input, shape index: {}]
  %s4 = inlined_call_operand.vmem [shape: f32[1,256], index: 4, kind: input, shape index: {}]
  %s5 = inlined_call_operand.<no memory space> [shape: f32[1], index: 5, kind: input, shape index: {}]
  %s6 = inlined_call_operand.hbm [shape: f32[1,384], index: 6, kind: output, shape index: {}]
  %s7 = sld [smem:[#allocation0]]
  $region34: #{tpu_custom_call.1} parent=0
    _
  %s9 = ssub.s32 1, %s7
  %s10 = scalar_select 0, %s9, %s7
  %11 = sst [smem:[#allocation3]] %s5
  $region1: #{tpu_custom_call.1} parent=0
    #allocation4 [shape = 'u8[1536]{0}', space=vmem, size = 0x800, scoped, tag = 'output window, operand 0, single buffered']
    #allocation5 [shape = 's32[1]{0}', space=sflag, size = 0x4, scoped, tag = 'scoped memory for tpu_custom_call.1']
    %12 = vsyncpa [#allocation5], 0
    // Predicated region
    $region2: #{tpu_custom_call.1} parent=1 // pred_check
      _
    $region3: #{tpu_custom_call.1} parent=1 // pred_check_branch
      %14 = sbr.rel (0) target = $region5
    $region4: #{tpu_custom_call.1} parent=1 // pred_region
      _
    $region5: #{tpu_custom_call.1} parent=1 // pred_fallthru
      _
    // Predicated region
    $region6: #{tpu_custom_call.1} parent=1 // pred_check
      _
    $region7: #{tpu_custom_call.1} parent=1 // pred_check_branch
      %16 = sbr.rel (0) target = $region9
    $region8: #{tpu_custom_call.1} parent=1 // pred_region
      _
    $region9: #{tpu_custom_call.1} parent=1 // pred_fallthru
      _
    // Predicated region
    $region10: #{tpu_custom_call.1} parent=1 // pred_check
      _
    $region11: #{tpu_custom_call.1} parent=1 // pred_check_branch
      %18 = sbr.rel (0) target = $region13
    $region12: #{tpu_custom_call.1} parent=1 // pred_region
      _
    $region13: #{tpu_custom_call.1} parent=1 // pred_fallthru
      _
    // Predicated region
    $region14: #{tpu_custom_call.1} parent=1 // pred_check
      _
    $region15: #{tpu_custom_call.1} parent=1 // pred_check_branch
      %20 = sbr.rel (0) target = $region17
    $region16: #{tpu_custom_call.1} parent=1 // pred_region
      _
    $region17: #{tpu_custom_call.1} parent=1 // pred_fallthru
      _
    // Predicated region
    $region18: #{tpu_custom_call.1} parent=1 // pred_check
      _
    $region19: #{tpu_custom_call.1} parent=1 // pred_check_branch
      %22 = sbr.rel (0) target = $region21
    $region20: #{tpu_custom_call.1} parent=1 // pred_region
      _
    $region21: #{tpu_custom_call.1} parent=1 // pred_fallthru
      _
    // Predicated region
    $region22: #{tpu_custom_call.1} parent=1 // pred_check
      _
    $region23: #{tpu_custom_call.1} parent=1 // pred_check_branch
      %24 = sbr.rel (0) target = $region25
    $region24: #{tpu_custom_call.1} parent=1 // pred_region
      _
    $region25: #{tpu_custom_call.1} parent=1 // pred_fallthru
      _
    %v25 = vld [vmem:[%s1] sm:$0xff]
    %v26 = vld [vmem:[%s1 + $0x8] sm:$0xff]
    %v27 = vld [vmem:[%s1 + $0x10] sm:$0xff]
    %v28 = vld [vmem:[%s1 + $0x18] sm:$0xff]
    %v29 = vld [vmem:[%s1 + $0x20] sm:$0xff]
    %v30 = vld [vmem:[%s1 + $0x28] sm:$0xff]
    %v31 = vld [vmem:[%s1 + $0x30] sm:$0xff]
    %v32 = vld [vmem:[%s1 + $0x38] sm:$0xff]
    %v33 = vld [vmem:[%s1 + $0x40] sm:$0xff]
    %v34 = vld [vmem:[%s1 + $0x48] sm:$0xff]
    %v35 = vld [vmem:[%s1 + $0x50] sm:$0xff]
    %v36 = vld [vmem:[%s1 + $0x58] sm:$0xff]
    %v37 = vld [vmem:[%s1 + $0x60] sm:$0xff]
    %v38 = vld [vmem:[%s1 + $0x68] sm:$0xff]
    %v39 = vld [vmem:[%s1 + $0x70] sm:$0xff]
    %v40 = vld [vmem:[%s1 + $0x78] sm:$0xff]
    %v41 = vld [vmem:[%s1 + $0x80] sm:$0xff]
    %v42 = vld [vmem:[%s1 + $0x88] sm:$0xff]
    %v43 = vld [vmem:[%s1 + $0x90] sm:$0xff]
    %v44 = vld [vmem:[%s1 + $0x98] sm:$0xff]
    %v45 = vld [vmem:[%s1 + $0xa0] sm:$0xff]
    %v46 = vld [vmem:[%s1 + $0xa8] sm:$0xff]
    %v47 = vld [vmem:[%s1 + $0xb0] sm:$0xff]
    %v48 = vld [vmem:[%s1 + $0xb8] sm:$0xff]
    %v49 = vld [vmem:[%s1 + $0xc0] sm:$0xff]
    %v50 = vld [vmem:[%s1 + $0xc8] sm:$0xff]
    %v51 = vld [vmem:[%s1 + $0xd0] sm:$0xff]
    %v52 = vld [vmem:[%s1 + $0xd8] sm:$0xff]
    %v53 = vld [vmem:[%s1 + $0xe0] sm:$0xff]
    %v54 = vld [vmem:[%s1 + $0xe8] sm:$0xff]
    %v55 = vld [vmem:[%s1 + $0xf0] sm:$0xff]
    %v56 = vld [vmem:[%s1 + $0xf8] sm:$0xff]
    %v57 = vld [vmem:[%s0] sm:$0xff]
    %v58 = vld [vmem:[%s0 + $0x8] sm:$0xff]
    %v59 = vld [vmem:[%s0 + $0x10] sm:$0xff]
    %vm60 = vcmask 64512
    %v62 = vsel %vm60, %v25, 0
    %v65 = vsel %vm60, %v26, 0
    %v68 = vsel %vm60, %v27, 0
    %v71 = vsel %vm60, %v28, 0
    %v74 = vsel %vm60, %v29, 0
    %v77 = vsel %vm60, %v30, 0
    %v80 = vsel %vm60, %v31, 0
    %v83 = vsel %vm60, %v32, 0
    %v86 = vsel %vm60, %v33, 0
    %v89 = vsel %vm60, %v34, 0
    %v92 = vsel %vm60, %v35, 0
    %v95 = vsel %vm60, %v36, 0
    %v98 = vsel %vm60, %v37, 0
    %v101 = vsel %vm60, %v38, 0
    %v104 = vsel %vm60, %v39, 0
    %v107 = vsel %vm60, %v40, 0
    %v110 = vsel %vm60, %v41, 0
    %v113 = vsel %vm60, %v42, 0
    %v116 = vsel %vm60, %v43, 0
    %v119 = vsel %vm60, %v44, 0
    %v122 = vsel %vm60, %v45, 0
    %v125 = vsel %vm60, %v46, 0
    %v128 = vsel %vm60, %v47, 0
    %v131 = vsel %vm60, %v48, 0
    %v134 = vsel %vm60, %v49, 0
    %v137 = vsel %vm60, %v50, 0
    %v140 = vsel %vm60, %v51, 0
    %v143 = vsel %vm60, %v52, 0
    %v146 = vsel %vm60, %v53, 0
    %v149 = vsel %vm60, %v54, 0
    %v152 = vsel %vm60, %v55, 0
    %v155 = vsel %vm60, %v56, 0
    %157 = vmatprep.subr.mxu0 0.0
    %158 = vmatpush1.msra.mxu0 0.0
    %159 = vmatprep.subr.mxu0 0.0
    %160 = vmatpush1.msra.mxu0 0.0
    %161 = vmatprep.subr.mxu0 0.0
    %162 = vmatpush1.msra.mxu0 0.0
    %163 = vmatprep.subr.mxu0 0.0
    %164 = vmatpush1.msra.mxu0 0.0
    %165 = vmatprep.subr.mxu0 0.0
    %166 = vmatpush1.msra.mxu0 0.0
    %167 = vmatprep.subr.mxu0 0.0
    %168 = vmatpush1.msra.mxu0 0.0
    %169 = vmatprep.subr.mxu0 0.0
    %170 = vmatpush1.msra.mxu0 0.0
    %171 = vmatprep.subr.mxu0 0.0
    %172 = vmatpush1.msra.mxu0 0.0
    %173 = vmatprep.subr.mxu0 0.0
    %174 = vmatpush1.msra.mxu0 0.0
    %175 = vmatprep.subr.mxu0 0.0
    %176 = vmatpush1.msra.mxu0 0.0
    %177 = vmatprep.subr.mxu0 0.0
    %178 = vmatpush1.msra.mxu0 0.0
    %179 = vmatprep.subr.mxu0 0.0
    %180 = vmatpush1.msra.mxu0 0.0
    %181 = vmatprep.subr.mxu0 0.0
    %182 = vmatpush1.msra.mxu0 0.0
    %183 = vmatprep.subr.mxu0 0.0
    %184 = vmatpush1.msra.mxu0 0.0
    %185 = vmatprep.subr.mxu0 0.0
    %186 = vmatpush1.msra.mxu0 0.0
    %187 = vmatprep.subr.mxu0 %v58
    %188 = vmatpush1.msra.mxu0 %v57
    %189 = vmatprep.subr.mxu0 0.0
    %190 = vmatpush2.msra.mxu0 0.0
    %191 = vmatprep.subr.mxu0 0.0
    %192 = vmatpush2.msra.mxu0 0.0
    %193 = vmatprep.subr.mxu0 0.0
    %194 = vmatpush2.msra.mxu0 0.0
    %195 = vmatprep.subr.mxu0 0.0
    %196 = vmatpush2.msra.mxu0 0.0
    %197 = vmatprep.subr.mxu0 0.0
    %198 = vmatpush2.msra.mxu0 0.0
    %199 = vmatprep.subr.mxu0 0.0
    %200 = vmatpush2.msra.mxu0 0.0
    %201 = vmatprep.subr.mxu0 0.0
    %202 = vmatpush2.msra.mxu0 0.0
    %203 = vmatprep.subr.mxu0 0.0
    %204 = vmatpush2.msra.mxu0 0.0
    %205 = vmatprep.subr.mxu0 0.0
    %206 = vmatpush2.msra.mxu0 0.0
    %207 = vmatprep.subr.mxu0 0.0
    %208 = vmatpush2.msra.mxu0 0.0
    %209 = vmatprep.subr.mxu0 0.0
    %210 = vmatpush2.msra.mxu0 0.0
    %211 = vmatprep.subr.mxu0 0.0
    %212 = vmatpush2.msra.mxu0 0.0
    %213 = vmatprep.subr.mxu0 0.0
    %214 = vmatpush2.msra.mxu0 0.0
    %215 = vmatprep.subr.mxu0 0.0
    %216 = vmatpush2.msra.mxu0 0.0
    %217 = vmatprep.subr.mxu0 0.0
    %218 = vmatpush2.msra.mxu0 0.0
    %219 = vmatprep.subr.mxu0 0.0
    %220 = vmatpush2.msra.mxu0 0.0
    %221 = vmatprep.mubr.f32.mxu0 0.0
    %222 = vmatmul.mubr.f32.gmra.mxu0 %v62
    %v223 = vpop.f32.mrf.mxu0
    %v224 = vadd.f32 0.0, %v223
    %v225 = vpop.f32.mrf.mxu0
    %v226 = vadd.f32 0.0, %v225
    %227 = vmatprep.mubr.f32.mxu0 0.0
    %228 = vmatmul.mubr.f32.gmra.mxu0 %v65
    %v229 = vpop.f32.mrf.mxu0
    %v230 = vadd.f32 0.0, %v229
    %v231 = vpop.f32.mrf.mxu0
    %v232 = vadd.f32 0.0, %v231
    %233 = vmatprep.mubr.f32.mxu0 0.0
    %234 = vmatmul.mubr.f32.gmra.mxu0 %v68
    %v235 = vpop.f32.mrf.mxu0
    %v236 = vadd.f32 0.0, %v235
    %v237 = vpop.f32.mrf.mxu0
    %v238 = vadd.f32 0.0, %v237
    %239 = vmatprep.mubr.f32.mxu0 0.0
    %240 = vmatmul.mubr.f32.gmra.mxu0 %v71
    %v241 = vpop.f32.mrf.mxu0
    %v242 = vadd.f32 0.0, %v241
    %v243 = vpop.f32.mrf.mxu0
    %v244 = vadd.f32 0.0, %v243
    %245 = vmatprep.mubr.f32.mxu0 0.0
    %246 = vmatmul.mubr.f32.gmra.mxu0 %v74
    %v247 = vpop.f32.mrf.mxu0
    %v248 = vadd.f32 0.0, %v247
    %v249 = vpop.f32.mrf.mxu0
    %v250 = vadd.f32 0.0, %v249
    %251 = vmatprep.mubr.f32.mxu0 0.0
    %252 = vmatmul.mubr.f32.gmra.mxu0 %v77
    %v253 = vpop.f32.mrf.mxu0
    %v254 = vadd.f32 0.0, %v253
    %v255 = vpop.f32.mrf.mxu0
    %v256 = vadd.f32 0.0, %v255
    %257 = vmatprep.mubr.f32.mxu0 0.0
    %258 = vmatmul.mubr.f32.gmra.mxu0 %v80
    %v259 = vpop.f32.mrf.mxu0
    %v260 = vadd.f32 0.0, %v259
    %v261 = vpop.f32.mrf.mxu0
    %v262 = vadd.f32 0.0, %v261
    %263 = vmatprep.mubr.f32.mxu0 0.0
    %264 = vmatmul.mubr.f32.gmra.mxu0 %v83
    %v265 = vpop.f32.mrf.mxu0
    %v266 = vadd.f32 0.0, %v265
    %v267 = vpop.f32.mrf.mxu0
    %v268 = vadd.f32 0.0, %v267
    %269 = vmatprep.mubr.f32.mxu0 0.0
    %270 = vmatmul.mubr.f32.gmra.mxu0 %v86
    %v271 = vpop.f32.mrf.mxu0
    %v272 = vadd.f32 0.0, %v271
    %v273 = vpop.f32.mrf.mxu0
    %v274 = vadd.f32 0.0, %v273
    %275 = vmatprep.mubr.f32.mxu0 0.0
    %276 = vmatmul.mubr.f32.gmra.mxu0 %v89
    %v277 = vpop.f32.mrf.mxu0
    %v278 = vadd.f32 0.0, %v277
    %v279 = vpop.f32.mrf.mxu0
    %v280 = vadd.f32 0.0, %v279
    %281 = vmatprep.mubr.f32.mxu0 0.0
    %282 = vmatmul.mubr.f32.gmra.mxu0 %v92
    %v283 = vpop.f32.mrf.mxu0
    %v284 = vadd.f32 0.0, %v283
    %v285 = vpop.f32.mrf.mxu0
    %v286 = vadd.f32 0.0, %v285
    %287 = vmatprep.mubr.f32.mxu0 0.0
    %288 = vmatmul.mubr.f32.gmra.mxu0 %v95
    %v289 = vpop.f32.mrf.mxu0
    %v290 = vadd.f32 0.0, %v289
    %v291 = vpop.f32.mrf.mxu0
    %v292 = vadd.f32 0.0, %v291
    %293 = vmatprep.mubr.f32.mxu0 0.0
    %294 = vmatmul.mubr.f32.gmra.mxu0 %v98
    %v295 = vpop.f32.mrf.mxu0
    %v296 = vadd.f32 0.0, %v295
    %v297 = vpop.f32.mrf.mxu0
    %v298 = vadd.f32 0.0, %v297
    %299 = vmatprep.mubr.f32.mxu0 0.0
    %300 = vmatmul.mubr.f32.gmra.mxu0 %v101
    %v301 = vpop.f32.mrf.mxu0
    %v302 = vadd.f32 0.0, %v301
    %v303 = vpop.f32.mrf.mxu0
    %v304 = vadd.f32 0.0, %v303
    %305 = vmatprep.mubr.f32.mxu0 0.0
    %306 = vmatmul.mubr.f32.gmra.mxu0 %v104
    %v307 = vpop.f32.mrf.mxu0
    %v308 = vadd.f32 0.0, %v307
    %v309 = vpop.f32.mrf.mxu0
    %v310 = vadd.f32 0.0, %v309
    %311 = vmatprep.mubr.f32.mxu0 0.0
    %312 = vmatmul.mubr.f32.gmra.mxu0 %v107
    %v313 = vpop.f32.mrf.mxu0
    %v314 = vadd.f32 0.0, %v313
    %v315 = vpop.f32.mrf.mxu0
    %v316 = vadd.f32 0.0, %v315
    %317 = vmatprep.mubr.f32.mxu0 0.0
    %318 = vmatmul.mubr.f32.gmra.mxu0 %v110
    %v319 = vpop.f32.mrf.mxu0
    %v320 = vadd.f32 0.0, %v319
    %v321 = vpop.f32.mrf.mxu0
    %v322 = vadd.f32 0.0, %v321
    %323 = vmatprep.mubr.f32.mxu0 0.0
    %324 = vmatmul.mubr.f32.gmra.mxu0 %v113
    %v325 = vpop.f32.mrf.mxu0
    %v326 = vadd.f32 0.0, %v325
    %v327 = vpop.f32.mrf.mxu0
    %v328 = vadd.f32 0.0, %v327
    %329 = vmatprep.mubr.f32.mxu0 0.0
    %330 = vmatmul.mubr.f32.gmra.mxu0 %v116
    %v331 = vpop.f32.mrf.mxu0
    %v332 = vadd.f32 0.0, %v331
    %v333 = vpop.f32.mrf.mxu0
    %v334 = vadd.f32 0.0, %v333
    %335 = vmatprep.mubr.f32.mxu0 0.0
    %336 = vmatmul.mubr.f32.gmra.mxu0 %v119
    %v337 = vpop.f32.mrf.mxu0
    %v338 = vadd.f32 0.0, %v337
    %v339 = vpop.f32.mrf.mxu0
    %v340 = vadd.f32 0.0, %v339
    %341 = vmatprep.mubr.f32.mxu0 0.0
    %342 = vmatmul.mubr.f32.gmra.mxu0 %v122
    %v343 = vpop.f32.mrf.mxu0
    %v344 = vadd.f32 0.0, %v343
    %v345 = vpop.f32.mrf.mxu0
    %v346 = vadd.f32 0.0, %v345
    %347 = vmatprep.mubr.f32.mxu0 0.0
    %348 = vmatmul.mubr.f32.gmra.mxu0 %v125
    %v349 = vpop.f32.mrf.mxu0
    %v350 = vadd.f32 0.0, %v349
    %v351 = vpop.f32.mrf.mxu0
    %v352 = vadd.f32 0.0, %v351
    %353 = vmatprep.mubr.f32.mxu0 0.0
    %354 = vmatmul.mubr.f32.gmra.mxu0 %v128
    %v355 = vpop.f32.mrf.mxu0
    %v356 = vadd.f32 0.0, %v355
    %v357 = vpop.f32.mrf.mxu0
    %v358 = vadd.f32 0.0, %v357
    %359 = vmatprep.mubr.f32.mxu0 0.0
    %360 = vmatmul.mubr.f32.gmra.mxu0 %v131
    %v361 = vpop.f32.mrf.mxu0
    %v362 = vadd.f32 0.0, %v361
    %v363 = vpop.f32.mrf.mxu0
    %v364 = vadd.f32 0.0, %v363
    %365 = vmatprep.mubr.f32.mxu0 0.0
    %366 = vmatmul.mubr.f32.gmra.mxu0 %v134
    %v367 = vpop.f32.mrf.mxu0
    %v368 = vadd.f32 0.0, %v367
    %v369 = vpop.f32.mrf.mxu0
    %v370 = vadd.f32 0.0, %v369
    %371 = vmatprep.mubr.f32.mxu0 0.0
    %372 = vmatmul.mubr.f32.gmra.mxu0 %v137
    %v373 = vpop.f32.mrf.mxu0
    %v374 = vadd.f32 0.0, %v373
    %v375 = vpop.f32.mrf.mxu0
    %v376 = vadd.f32 0.0, %v375
    %377 = vmatprep.mubr.f32.mxu0 0.0
    %378 = vmatmul.mubr.f32.gmra.mxu0 %v140
    %v379 = vpop.f32.mrf.mxu0
    %v380 = vadd.f32 0.0, %v379
    %v381 = vpop.f32.mrf.mxu0
    %v382 = vadd.f32 0.0, %v381
    %383 = vmatprep.mubr.f32.mxu0 0.0
    %384 = vmatmul.mubr.f32.gmra.mxu0 %v143
    %v385 = vpop.f32.mrf.mxu0
    %v386 = vadd.f32 0.0, %v385
    %v387 = vpop.f32.mrf.mxu0
    %v388 = vadd.f32 0.0, %v387
    %389 = vmatprep.mubr.f32.mxu0 0.0
    %390 = vmatmul.mubr.f32.gmra.mxu0 %v146
    %v391 = vpop.f32.mrf.mxu0
    %v392 = vadd.f32 0.0, %v391
    %v393 = vpop.f32.mrf.mxu0
    %v394 = vadd.f32 0.0, %v393
    %395 = vmatprep.mubr.f32.mxu0 0.0
    %396 = vmatmul.mubr.f32.gmra.mxu0 %v149
    %v397 = vpop.f32.mrf.mxu0
    %v398 = vadd.f32 0.0, %v397
    %v399 = vpop.f32.mrf.mxu0
    %v400 = vadd.f32 0.0, %v399
    %401 = vmatprep.mubr.f32.mxu0 0.0
    %402 = vmatmul.mubr.f32.gmra.mxu0 %v152
    %v403 = vpop.f32.mrf.mxu0
    %v404 = vadd.f32 0.0, %v403
    %v405 = vpop.f32.mrf.mxu0
    %v406 = vadd.f32 0.0, %v405
    %407 = vmatprep.mubr.f32.mxu0 0.0
    %408 = vmatmul.mubr.f32.gmra.mxu0 %v155
    %v409 = vpop.f32.mrf.mxu0
    %v410 = vadd.f32 0.0, %v409
    %v411 = vpop.f32.mrf.mxu0
    %v412 = vadd.f32 0.0, %v411
    %413 = vdwg.mxu0
    %414 = vmatprep.subr.mxu0 0.0
    %415 = vmatpush1.msra.mxu0 0.0
    %416 = vmatprep.subr.mxu0 0.0
    %417 = vmatpush1.msra.mxu0 0.0
    %418 = vmatprep.subr.mxu0 0.0
    %419 = vmatpush1.msra.mxu0 0.0
    %420 = vmatprep.subr.mxu0 0.0
    %421 = vmatpush1.msra.mxu0 0.0
    %422 = vmatprep.subr.mxu0 0.0
    %423 = vmatpush1.msra.mxu0 0.0
    %424 = vmatprep.subr.mxu0 0.0
    %425 = vmatpush1.msra.mxu0 0.0
    %426 = vmatprep.subr.mxu0 0.0
    %427 = vmatpush1.msra.mxu0 0.0
    %428 = vmatprep.subr.mxu0 0.0
    %429 = vmatpush1.msra.mxu0 0.0
    %430 = vmatprep.subr.mxu0 0.0
    %431 = vmatpush1.msra.mxu0 0.0
    %432 = vmatprep.subr.mxu0 0.0
    %433 = vmatpush1.msra.mxu0 0.0
    %434 = vmatprep.subr.mxu0 0.0
    %435 = vmatpush1.msra.mxu0 0.0
    %436 = vmatprep.subr.mxu0 0.0
    %437 = vmatpush1.msra.mxu0 0.0
    %438 = vmatprep.subr.mxu0 0.0
    %439 = vmatpush1.msra.mxu0 0.0
    %440 = vmatprep.subr.mxu0 0.0
    %441 = vmatpush1.msra.mxu0 0.0
    %442 = vmatprep.subr.mxu0 0.0
    %443 = vmatpush1.msra.mxu0 0.0
    %444 = vmatprep.subr.mxu0 0.0
    %445 = vmatpush1.msra.mxu0 %v59
    %446 = vmatprep.subr.mxu0 0.0
    %447 = vmatpush2.msra.mxu0 0.0
    %448 = vmatprep.subr.mxu0 0.0
    %449 = vmatpush2.msra.mxu0 0.0
    %450 = vmatprep.subr.mxu0 0.0
    %451 = vmatpush2.msra.mxu0 0.0
    %452 = vmatprep.subr.mxu0 0.0
    %453 = vmatpush2.msra.mxu0 0.0
    %454 = vmatprep.subr.mxu0 0.0
    %455 = vmatpush2.msra.mxu0 0.0
    %456 = vmatprep.subr.mxu0 0.0
    %457 = vmatpush2.msra.mxu0 0.0
    %458 = vmatprep.subr.mxu0 0.0
    %459 = vmatpush2.msra.mxu0 0.0
    %460 = vmatprep.subr.mxu0 0.0
    %461 = vmatpush2.msra.mxu0 0.0
    %462 = vmatprep.subr.mxu0 0.0
    %463 = vmatpush2.msra.mxu0 0.0
    %464 = vmatprep.subr.mxu0 0.0
    %465 = vmatpush2.msra.mxu0 0.0
    %466 = vmatprep.subr.mxu0 0.0
    %467 = vmatpush2.msra.mxu0 0.0
    %468 = vmatprep.subr.mxu0 0.0
    %469 = vmatpush2.msra.mxu0 0.0
    %470 = vmatprep.subr.mxu0 0.0
    %471 = vmatpush2.msra.mxu0 0.0
    %472 = vmatprep.subr.mxu0 0.0
    %473 = vmatpush2.msra.mxu0 0.0
    %474 = vmatprep.subr.mxu0 0.0
    %475 = vmatpush2.msra.mxu0 0.0
    %476 = vmatprep.subr.mxu0 0.0
    %477 = vmatpush2.msra.mxu0 0.0
    %478 = vmatprep.mubr.f32.mxu0 0.0
    %479 = vmatmul.mubr.f32.gmra.mxu0 %v62
    %v480 = vpop.f32.mrf.mxu0
    %v481 = vadd.f32 0.0, %v480
    %v482 = vpop.f32.mrf.mxu0
    %483 = vmatprep.mubr.f32.mxu0 0.0
    %484 = vmatmul.mubr.f32.gmra.mxu0 %v65
    %v485 = vpop.f32.mrf.mxu0
    %v486 = vadd.f32 0.0, %v485
    %v487 = vpop.f32.mrf.mxu0
    %488 = vmatprep.mubr.f32.mxu0 0.0
    %489 = vmatmul.mubr.f32.gmra.mxu0 %v68
    %v490 = vpop.f32.mrf.mxu0
    %v491 = vadd.f32 0.0, %v490
    %v492 = vpop.f32.mrf.mxu0
    %493 = vmatprep.mubr.f32.mxu0 0.0
    %494 = vmatmul.mubr.f32.gmra.mxu0 %v71
    %v495 = vpop.f32.mrf.mxu0
    %v496 = vadd.f32 0.0, %v495
    %v497 = vpop.f32.mrf.mxu0
    %498 = vmatprep.mubr.f32.mxu0 0.0
    %499 = vmatmul.mubr.f32.gmra.mxu0 %v74
    %v500 = vpop.f32.mrf.mxu0
    %v501 = vadd.f32 0.0, %v500
    %v502 = vpop.f32.mrf.mxu0
    %503 = vmatprep.mubr.f32.mxu0 0.0
    %504 = vmatmul.mubr.f32.gmra.mxu0 %v77
    %v505 = vpop.f32.mrf.mxu0
    %v506 = vadd.f32 0.0, %v505
    %v507 = vpop.f32.mrf.mxu0
    %508 = vmatprep.mubr.f32.mxu0 0.0
    %509 = vmatmul.mubr.f32.gmra.mxu0 %v80
    %v510 = vpop.f32.mrf.mxu0
    %v511 = vadd.f32 0.0, %v510
    %v512 = vpop.f32.mrf.mxu0
    %513 = vmatprep.mubr.f32.mxu0 0.0
    %514 = vmatmul.mubr.f32.gmra.mxu0 %v83
    %v515 = vpop.f32.mrf.mxu0
    %v516 = vadd.f32 0.0, %v515
    %v517 = vpop.f32.mrf.mxu0
    %518 = vmatprep.mubr.f32.mxu0 0.0
    %519 = vmatmul.mubr.f32.gmra.mxu0 %v86
    %v520 = vpop.f32.mrf.mxu0
    %v521 = vadd.f32 0.0, %v520
    %v522 = vpop.f32.mrf.mxu0
    %523 = vmatprep.mubr.f32.mxu0 0.0
    %524 = vmatmul.mubr.f32.gmra.mxu0 %v89
    %v525 = vpop.f32.mrf.mxu0
    %v526 = vadd.f32 0.0, %v525
    %v527 = vpop.f32.mrf.mxu0
    %528 = vmatprep.mubr.f32.mxu0 0.0
    %529 = vmatmul.mubr.f32.gmra.mxu0 %v92
    %v530 = vpop.f32.mrf.mxu0
    %v531 = vadd.f32 0.0, %v530
    %v532 = vpop.f32.mrf.mxu0
    %533 = vmatprep.mubr.f32.mxu0 0.0
    %534 = vmatmul.mubr.f32.gmra.mxu0 %v95
    %v535 = vpop.f32.mrf.mxu0
    %v536 = vadd.f32 0.0, %v535
    %v537 = vpop.f32.mrf.mxu0
    %538 = vmatprep.mubr.f32.mxu0 0.0
    %539 = vmatmul.mubr.f32.gmra.mxu0 %v98
    %v540 = vpop.f32.mrf.mxu0
    %v541 = vadd.f32 0.0, %v540
    %v542 = vpop.f32.mrf.mxu0
    %543 = vmatprep.mubr.f32.mxu0 0.0
    %544 = vmatmul.mubr.f32.gmra.mxu0 %v101
    %v545 = vpop.f32.mrf.mxu0
    %v546 = vadd.f32 0.0, %v545
    %v547 = vpop.f32.mrf.mxu0
    %548 = vmatprep.mubr.f32.mxu0 0.0
    %549 = vmatmul.mubr.f32.gmra.mxu0 %v104
    %v550 = vpop.f32.mrf.mxu0
    %v551 = vadd.f32 0.0, %v550
    %v552 = vpop.f32.mrf.mxu0
    %553 = vmatprep.mubr.f32.mxu0 0.0
    %554 = vmatmul.mubr.f32.gmra.mxu0 %v107
    %v555 = vpop.f32.mrf.mxu0
    %v556 = vadd.f32 0.0, %v555
    %v557 = vpop.f32.mrf.mxu0
    %558 = vmatprep.mubr.f32.mxu0 0.0
    %559 = vmatmul.mubr.f32.gmra.mxu0 %v110
    %v560 = vpop.f32.mrf.mxu0
    %v561 = vadd.f32 0.0, %v560
    %v562 = vpop.f32.mrf.mxu0
    %563 = vmatprep.mubr.f32.mxu0 0.0
    %564 = vmatmul.mubr.f32.gmra.mxu0 %v113
    %v565 = vpop.f32.mrf.mxu0
    %v566 = vadd.f32 0.0, %v565
    %v567 = vpop.f32.mrf.mxu0
    %568 = vmatprep.mubr.f32.mxu0 0.0
    %569 = vmatmul.mubr.f32.gmra.mxu0 %v116
    %v570 = vpop.f32.mrf.mxu0
    %v571 = vadd.f32 0.0, %v570
    %v572 = vpop.f32.mrf.mxu0
    %573 = vmatprep.mubr.f32.mxu0 0.0
    %574 = vmatmul.mubr.f32.gmra.mxu0 %v119
    %v575 = vpop.f32.mrf.mxu0
    %v576 = vadd.f32 0.0, %v575
    %v577 = vpop.f32.mrf.mxu0
    %578 = vmatprep.mubr.f32.mxu0 0.0
    %579 = vmatmul.mubr.f32.gmra.mxu0 %v122
    %v580 = vpop.f32.mrf.mxu0
    %v581 = vadd.f32 0.0, %v580
    %v582 = vpop.f32.mrf.mxu0
    %583 = vmatprep.mubr.f32.mxu0 0.0
    %584 = vmatmul.mubr.f32.gmra.mxu0 %v125
    %v585 = vpop.f32.mrf.mxu0
    %v586 = vadd.f32 0.0, %v585
    %v587 = vpop.f32.mrf.mxu0
    %588 = vmatprep.mubr.f32.mxu0 0.0
    %589 = vmatmul.mubr.f32.gmra.mxu0 %v128
    %v590 = vpop.f32.mrf.mxu0
    %v591 = vadd.f32 0.0, %v590
    %v592 = vpop.f32.mrf.mxu0
    %593 = vmatprep.mubr.f32.mxu0 0.0
    %594 = vmatmul.mubr.f32.gmra.mxu0 %v131
    %v595 = vpop.f32.mrf.mxu0
    %v596 = vadd.f32 0.0, %v595
    %v597 = vpop.f32.mrf.mxu0
    %598 = vmatprep.mubr.f32.mxu0 0.0
    %599 = vmatmul.mubr.f32.gmra.mxu0 %v134
    %v600 = vpop.f32.mrf.mxu0
    %v601 = vadd.f32 0.0, %v600
    %v602 = vpop.f32.mrf.mxu0
    %603 = vmatprep.mubr.f32.mxu0 0.0
    %604 = vmatmul.mubr.f32.gmra.mxu0 %v137
    %v605 = vpop.f32.mrf.mxu0
    %v606 = vadd.f32 0.0, %v605
    %v607 = vpop.f32.mrf.mxu0
    %608 = vmatprep.mubr.f32.mxu0 0.0
    %609 = vmatmul.mubr.f32.gmra.mxu0 %v140
    %v610 = vpop.f32.mrf.mxu0
    %v611 = vadd.f32 0.0, %v610
    %v612 = vpop.f32.mrf.mxu0
    %613 = vmatprep.mubr.f32.mxu0 0.0
    %614 = vmatmul.mubr.f32.gmra.mxu0 %v143
    %v615 = vpop.f32.mrf.mxu0
    %v616 = vadd.f32 0.0, %v615
    %v617 = vpop.f32.mrf.mxu0
    %618 = vmatprep.mubr.f32.mxu0 0.0
    %619 = vmatmul.mubr.f32.gmra.mxu0 %v146
    %v620 = vpop.f32.mrf.mxu0
    %v621 = vadd.f32 0.0, %v620
    %v622 = vpop.f32.mrf.mxu0
    %623 = vmatprep.mubr.f32.mxu0 0.0
    %624 = vmatmul.mubr.f32.gmra.mxu0 %v149
    %v625 = vpop.f32.mrf.mxu0
    %v626 = vadd.f32 0.0, %v625
    %v627 = vpop.f32.mrf.mxu0
    %628 = vmatprep.mubr.f32.mxu0 0.0
    %629 = vmatmul.mubr.f32.gmra.mxu0 %v152
    %v630 = vpop.f32.mrf.mxu0
    %v631 = vadd.f32 0.0, %v630
    %v632 = vpop.f32.mrf.mxu0
    %633 = vmatprep.mubr.f32.mxu0 0.0
    %634 = vmatmul.mubr.f32.gmra.mxu0 %v155
    %v635 = vpop.f32.mrf.mxu0
    %v636 = vadd.f32 0.0, %v635
    %v637 = vpop.f32.mrf.mxu0
    %638 = vdwg.mxu0
    %639 = vst [vmem:[#allocation2] sm:$0xff] %v224
    %640 = vst [vmem:[#allocation2 + $0x8] sm:$0xff] %v226
    %641 = vst [vmem:[#allocation2 + $0x10] sm:$0xff] %v481
    %642 = vst [vmem:[#allocation2 + $0x18] sm:$0xff] %v230
    %643 = vst [vmem:[#allocation2 + $0x20] sm:$0xff] %v232
    %644 = vst [vmem:[#allocation2 + $0x28] sm:$0xff] %v486
    %645 = vst [vmem:[#allocation2 + $0x30] sm:$0xff] %v236
    %646 = vst [vmem:[#allocation2 + $0x38] sm:$0xff] %v238
    %647 = vst [vmem:[#allocation2 + $0x40] sm:$0xff] %v491
    %648 = vst [vmem:[#allocation2 + $0x48] sm:$0xff] %v242
    %649 = vst [vmem:[#allocation2 + $0x50] sm:$0xff] %v244
    %650 = vst [vmem:[#allocation2 + $0x58] sm:$0xff] %v496
    %651 = vst [vmem:[#allocation2 + $0x60] sm:$0xff] %v248
    %652 = vst [vmem:[#allocation2 + $0x68] sm:$0xff] %v250
    %653 = vst [vmem:[#allocation2 + $0x70] sm:$0xff] %v501
    %654 = vst [vmem:[#allocation2 + $0x78] sm:$0xff] %v254
    %655 = vst [vmem:[#allocation2 + $0x80] sm:$0xff] %v256
    %656 = vst [vmem:[#allocation2 + $0x88] sm:$0xff] %v506
    %657 = vst [vmem:[#allocation2 + $0x90] sm:$0xff] %v260
    %658 = vst [vmem:[#allocation2 + $0x98] sm:$0xff] %v262
    %659 = vst [vmem:[#allocation2 + $0xa0] sm:$0xff] %v511
    %660 = vst [vmem:[#allocation2 + $0xa8] sm:$0xff] %v266
    %661 = vst [vmem:[#allocation2 + $0xb0] sm:$0xff] %v268
    %662 = vst [vmem:[#allocation2 + $0xb8] sm:$0xff] %v516
    %663 = vst [vmem:[#allocation2 + $0xc0] sm:$0xff] %v272
    %664 = vst [vmem:[#allocation2 + $0xc8] sm:$0xff] %v274
    %665 = vst [vmem:[#allocation2 + $0xd0] sm:$0xff] %v521
    %666 = vst [vmem:[#allocation2 + $0xd8] sm:$0xff] %v278
    %667 = vst [vmem:[#allocation2 + $0xe0] sm:$0xff] %v280
    %668 = vst [vmem:[#allocation2 + $0xe8] sm:$0xff] %v526
    %669 = vst [vmem:[#allocation2 + $0xf0] sm:$0xff] %v284
    %670 = vst [vmem:[#allocation2 + $0xf8] sm:$0xff] %v286
    %671 = vst [vmem:[#allocation2 + $0x100] sm:$0xff] %v531
    %672 = vst [vmem:[#allocation2 + $0x108] sm:$0xff] %v290
    %673 = vst [vmem:[#allocation2 + $0x110] sm:$0xff] %v292
    %674 = vst [vmem:[#allocation2 + $0x118] sm:$0xff] %v536
    %675 = vst [vmem:[#allocation2 + $0x120] sm:$0xff] %v296
    %676 = vst [vmem:[#allocation2 + $0x128] sm:$0xff] %v298
    %677 = vst [vmem:[#allocation2 + $0x130] sm:$0xff] %v541
    %678 = vst [vmem:[#allocation2 + $0x138] sm:$0xff] %v302
    %679 = vst [vmem:[#allocation2 + $0x140] sm:$0xff] %v304
    %680 = vst [vmem:[#allocation2 + $0x148] sm:$0xff] %v546
    %681 = vst [vmem:[#allocation2 + $0x150] sm:$0xff] %v308
    %682 = vst [vmem:[#allocation2 + $0x158] sm:$0xff] %v310
    %683 = vst [vmem:[#allocation2 + $0x160] sm:$0xff] %v551
    %684 = vst [vmem:[#allocation2 + $0x168] sm:$0xff] %v314
    %685 = vst [vmem:[#allocation2 + $0x170] sm:$0xff] %v316
    %686 = vst [vmem:[#allocation2 + $0x178] sm:$0xff] %v556
    %687 = vst [vmem:[#allocation2 + $0x180] sm:$0xff] %v320
    %688 = vst [vmem:[#allocation2 + $0x188] sm:$0xff] %v322
    %689 = vst [vmem:[#allocation2 + $0x190] sm:$0xff] %v561
    %690 = vst [vmem:[#allocation2 + $0x198] sm:$0xff] %v326
    %691 = vst [vmem:[#allocation2 + $0x1a0] sm:$0xff] %v328
    %692 = vst [vmem:[#allocation2 + $0x1a8] sm:$0xff] %v566
    %693 = vst [vmem:[#allocation2 + $0x1b0] sm:$0xff] %v332
    %694 = vst [vmem:[#allocation2 + $0x1b8] sm:$0xff] %v334
    %695 = vst [vmem:[#allocation2 + $0x1c0] sm:$0xff] %v571
    %696 = vst [vmem:[#allocation2 + $0x1c8] sm:$0xff] %v338
    %697 = vst [vmem:[#allocation2 + $0x1d0] sm:$0xff] %v340
    %698 = vst [vmem:[#allocation2 + $0x1d8] sm:$0xff] %v576
    %699 = vst [vmem:[#allocation2 + $0x1e0] sm:$0xff] %v344
    %700 = vst [vmem:[#allocation2 + $0x1e8] sm:$0xff] %v346
    %701 = vst [vmem:[#allocation2 + $0x1f0] sm:$0xff] %v581
    %702 = vst [vmem:[#allocation2 + $0x1f8] sm:$0xff] %v350
    %703 = vst [vmem:[#allocation2 + $0x200] sm:$0xff] %v352
    %704 = vst [vmem:[#allocation2 + $0x208] sm:$0xff] %v586
    %705 = vst [vmem:[#allocation2 + $0x210] sm:$0xff] %v356
    %706 = vst [vmem:[#allocation2 + $0x218] sm:$0xff] %v358
    %707 = vst [vmem:[#allocation2 + $0x220] sm:$0xff] %v591
    %708 = vst [vmem:[#allocation2 + $0x228] sm:$0xff] %v362
    %709 = vst [vmem:[#allocation2 + $0x230] sm:$0xff] %v364
    %710 = vst [vmem:[#allocation2 + $0x238] sm:$0xff] %v596
    %711 = vst [vmem:[#allocation2 + $0x240] sm:$0xff] %v368
    %712 = vst [vmem:[#allocation2 + $0x248] sm:$0xff] %v370
    %713 = vst [vmem:[#allocation2 + $0x250] sm:$0xff] %v601
    %714 = vst [vmem:[#allocation2 + $0x258] sm:$0xff] %v374
    %715 = vst [vmem:[#allocation2 + $0x260] sm:$0xff] %v376
    %716 = vst [vmem:[#allocation2 + $0x268] sm:$0xff] %v606
    %717 = vst [vmem:[#allocation2 + $0x270] sm:$0xff] %v380
    %718 = vst [vmem:[#allocation2 + $0x278] sm:$0xff] %v382
    %719 = vst [vmem:[#allocation2 + $0x280] sm:$0xff] %v611
    %720 = vst [vmem:[#allocation2 + $0x288] sm:$0xff] %v386
    %721 = vst [vmem:[#allocation2 + $0x290] sm:$0xff] %v388
    %722 = vst [vmem:[#allocation2 + $0x298] sm:$0xff] %v616
    %723 = vst [vmem:[#allocation2 + $0x2a0] sm:$0xff] %v392
    %724 = vst [vmem:[#allocation2 + $0x2a8] sm:$0xff] %v394
    %725 = vst [vmem:[#allocation2 + $0x2b0] sm:$0xff] %v621
    %726 = vst [vmem:[#allocation2 + $0x2b8] sm:$0xff] %v398
    %727 = vst [vmem:[#allocation2 + $0x2c0] sm:$0xff] %v400
    %728 = vst [vmem:[#allocation2 + $0x2c8] sm:$0xff] %v626
    %729 = vst [vmem:[#allocation2 + $0x2d0] sm:$0xff] %v404
    %730 = vst [vmem:[#allocation2 + $0x2d8] sm:$0xff] %v406
    %731 = vst [vmem:[#allocation2 + $0x2e0] sm:$0xff] %v631
    %732 = vst [vmem:[#allocation2 + $0x2e8] sm:$0xff] %v410
    %733 = vst [vmem:[#allocation2 + $0x2f0] sm:$0xff] %v412
    %734 = vst [vmem:[#allocation2 + $0x2f8] sm:$0xff] %v636
    %v735 = vld [vmem:[#allocation2] sm:$0xff]
    %v736 = vld [vmem:[#allocation2 + $0x8] sm:$0xff]
    %v737 = vld [vmem:[#allocation2 + $0x10] sm:$0xff]
    %v738 = vld [vmem:[#allocation2 + $0x18] sm:$0xff]
    %v739 = vld [vmem:[#allocation2 + $0x20] sm:$0xff]
    %v740 = vld [vmem:[#allocation2 + $0x28] sm:$0xff]
    %v741 = vld [vmem:[#allocation2 + $0x30] sm:$0xff]
    %v742 = vld [vmem:[#allocation2 + $0x38] sm:$0xff]
    %v743 = vld [vmem:[#allocation2 + $0x40] sm:$0xff]
    %v744 = vld [vmem:[#allocation2 + $0x48] sm:$0xff]
    %v745 = vld [vmem:[#allocation2 + $0x50] sm:$0xff]
    %v746 = vld [vmem:[#allocation2 + $0x58] sm:$0xff]
    %v747 = vld [vmem:[#allocation2 + $0x60] sm:$0xff]
    %v748 = vld [vmem:[#allocation2 + $0x68] sm:$0xff]
    %v749 = vld [vmem:[#allocation2 + $0x70] sm:$0xff]
    %v750 = vld [vmem:[#allocation2 + $0x78] sm:$0xff]
    %v751 = vld [vmem:[#allocation2 + $0x80] sm:$0xff]
    %v752 = vld [vmem:[#allocation2 + $0x88] sm:$0xff]
    %v753 = vld [vmem:[#allocation2 + $0x90] sm:$0xff]
    %v754 = vld [vmem:[#allocation2 + $0x98] sm:$0xff]
    %v755 = vld [vmem:[#allocation2 + $0xa0] sm:$0xff]
    %v756 = vld [vmem:[#allocation2 + $0xa8] sm:$0xff]
    %v757 = vld [vmem:[#allocation2 + $0xb0] sm:$0xff]
    %v758 = vld [vmem:[#allocation2 + $0xb8] sm:$0xff]
    %v759 = vld [vmem:[#allocation2 + $0xc0] sm:$0xff]
    %v760 = vld [vmem:[#allocation2 + $0xc8] sm:$0xff]
    %v761 = vld [vmem:[#allocation2 + $0xd0] sm:$0xff]
    %v762 = vld [vmem:[#allocation2 + $0xd8] sm:$0xff]
    %v763 = vld [vmem:[#allocation2 + $0xe0] sm:$0xff]
    %v764 = vld [vmem:[#allocation2 + $0xe8] sm:$0xff]
    %v765 = vld [vmem:[#allocation2 + $0xf0] sm:$0xff]
    %v766 = vld [vmem:[#allocation2 + $0xf8] sm:$0xff]
    %v767 = vld [vmem:[#allocation2 + $0x100] sm:$0xff]
    %v768 = vld [vmem:[#allocation2 + $0x108] sm:$0xff]
    %v769 = vld [vmem:[#allocation2 + $0x110] sm:$0xff]
    %v770 = vld [vmem:[#allocation2 + $0x118] sm:$0xff]
    %v771 = vld [vmem:[#allocation2 + $0x120] sm:$0xff]
    %v772 = vld [vmem:[#allocation2 + $0x128] sm:$0xff]
    %v773 = vld [vmem:[#allocation2 + $0x130] sm:$0xff]
    %v774 = vld [vmem:[#allocation2 + $0x138] sm:$0xff]
    %v775 = vld [vmem:[#allocation2 + $0x140] sm:$0xff]
    %v776 = vld [vmem:[#allocation2 + $0x148] sm:$0xff]
    %v777 = vld [vmem:[#allocation2 + $0x150] sm:$0xff]
    %v778 = vld [vmem:[#allocation2 + $0x158] sm:$0xff]
    %v779 = vld [vmem:[#allocation2 + $0x160] sm:$0xff]
    %v780 = vld [vmem:[#allocation2 + $0x168] sm:$0xff]
    %v781 = vld [vmem:[#allocation2 + $0x170] sm:$0xff]
    %v782 = vld [vmem:[#allocation2 + $0x178] sm:$0xff]
    %v783 = vld [vmem:[#allocation2 + $0x180] sm:$0xff]
    %v784 = vld [vmem:[#allocation2 + $0x188] sm:$0xff]
    %v785 = vld [vmem:[#allocation2 + $0x190] sm:$0xff]
    %v786 = vld [vmem:[#allocation2 + $0x198] sm:$0xff]
    %v787 = vld [vmem:[#allocation2 + $0x1a0] sm:$0xff]
    %v788 = vld [vmem:[#allocation2 + $0x1a8] sm:$0xff]
    %v789 = vld [vmem:[#allocation2 + $0x1b0] sm:$0xff]
    %v790 = vld [vmem:[#allocation2 + $0x1b8] sm:$0xff]
    %v791 = vld [vmem:[#allocation2 + $0x1c0] sm:$0xff]
    %v792 = vld [vmem:[#allocation2 + $0x1c8] sm:$0xff]
    %v793 = vld [vmem:[#allocation2 + $0x1d0] sm:$0xff]
    %v794 = vld [vmem:[#allocation2 + $0x1d8] sm:$0xff]
    %v795 = vld [vmem:[#allocation2 + $0x1e0] sm:$0xff]
    %v796 = vld [vmem:[#allocation2 + $0x1e8] sm:$0xff]
    %v797 = vld [vmem:[#allocation2 + $0x1f0] sm:$0xff]
    %v798 = vld [vmem:[#allocation2 + $0x1f8] sm:$0xff]
    %v799 = vld [vmem:[#allocation2 + $0x200] sm:$0xff]
    %v800 = vld [vmem:[#allocation2 + $0x208] sm:$0xff]
    %v801 = vld [vmem:[#allocation2 + $0x210] sm:$0xff]
    %v802 = vld [vmem:[#allocation2 + $0x218] sm:$0xff]
    %v803 = vld [vmem:[#allocation2 + $0x220] sm:$0xff]
    %v804 = vld [vmem:[#allocation2 + $0x228] sm:$0xff]
    %v805 = vld [vmem:[#allocation2 + $0x230] sm:$0xff]
    %v806 = vld [vmem:[#allocation2 + $0x238] sm:$0xff]
    %v807 = vld [vmem:[#allocation2 + $0x240] sm:$0xff]
    %v808 = vld [vmem:[#allocation2 + $0x248] sm:$0xff]
    %v809 = vld [vmem:[#allocation2 + $0x250] sm:$0xff]
    %v810 = vld [vmem:[#allocation2 + $0x258] sm:$0xff]
    %v811 = vld [vmem:[#allocation2 + $0x260] sm:$0xff]
    %v812 = vld [vmem:[#allocation2 + $0x268] sm:$0xff]
    %v813 = vld [vmem:[#allocation2 + $0x270] sm:$0xff]
    %v814 = vld [vmem:[#allocation2 + $0x278] sm:$0xff]
    %v815 = vld [vmem:[#allocation2 + $0x280] sm:$0xff]
    %v816 = vld [vmem:[#allocation2 + $0x288] sm:$0xff]
    %v817 = vld [vmem:[#allocation2 + $0x290] sm:$0xff]
    %v818 = vld [vmem:[#allocation2 + $0x298] sm:$0xff]
    %v819 = vld [vmem:[#allocation2 + $0x2a0] sm:$0xff]
    %v820 = vld [vmem:[#allocation2 + $0x2a8] sm:$0xff]
    %v821 = vld [vmem:[#allocation2 + $0x2b0] sm:$0xff]
    %v822 = vld [vmem:[#allocation2 + $0x2b8] sm:$0xff]
    %v823 = vld [vmem:[#allocation2 + $0x2c0] sm:$0xff]
    %v824 = vld [vmem:[#allocation2 + $0x2c8] sm:$0xff]
    %v825 = vld [vmem:[#allocation2 + $0x2d0] sm:$0xff]
    %v826 = vld [vmem:[#allocation2 + $0x2d8] sm:$0xff]
    %v827 = vld [vmem:[#allocation2 + $0x2e0] sm:$0xff]
    %v828 = vld [vmem:[#allocation2 + $0x2e8] sm:$0xff]
    %v829 = vld [vmem:[#allocation2 + $0x2f0] sm:$0xff]
    %v830 = vld [vmem:[#allocation2 + $0x2f8] sm:$0xff]
    %v831 = vadd.f32 %v735, %v736
    %v832 = vadd.f32 %v831, %v737
    %833 = vadd.xlane.f32.xlu0 %v832
    %v834 = vpop.xlane.xlu0 %833
    %v835 = vadd.f32 %v738, %v739
    %v836 = vadd.f32 %v835, %v740
    %837 = vadd.xlane.f32.xlu0 %v836
    %v838 = vpop.xlane.xlu0 %837
    %v839 = vadd.f32 %v741, %v742
    %v840 = vadd.f32 %v839, %v743
    %841 = vadd.xlane.f32.xlu0 %v840
    %v842 = vpop.xlane.xlu0 %841
    %v843 = vadd.f32 %v744, %v745
    %v844 = vadd.f32 %v843, %v746
    %845 = vadd.xlane.f32.xlu0 %v844
    %v846 = vpop.xlane.xlu0 %845
    %v847 = vadd.f32 %v747, %v748
    %v848 = vadd.f32 %v847, %v749
    %849 = vadd.xlane.f32.xlu0 %v848
    %v850 = vpop.xlane.xlu0 %849
    %v851 = vadd.f32 %v750, %v751
    %v852 = vadd.f32 %v851, %v752
    %853 = vadd.xlane.f32.xlu0 %v852
    %v854 = vpop.xlane.xlu0 %853
    %v855 = vadd.f32 %v753, %v754
    %v856 = vadd.f32 %v855, %v755
    %857 = vadd.xlane.f32.xlu0 %v856
    %v858 = vpop.xlane.xlu0 %857
    %v859 = vadd.f32 %v756, %v757
    %v860 = vadd.f32 %v859, %v758
    %861 = vadd.xlane.f32.xlu0 %v860
    %v862 = vpop.xlane.xlu0 %861
    %v863 = vadd.f32 %v759, %v760
    %v864 = vadd.f32 %v863, %v761
    %865 = vadd.xlane.f32.xlu0 %v864
    %v866 = vpop.xlane.xlu0 %865
    %v867 = vadd.f32 %v762, %v763
    %v868 = vadd.f32 %v867, %v764
    %869 = vadd.xlane.f32.xlu0 %v868
    %v870 = vpop.xlane.xlu0 %869
    %v871 = vadd.f32 %v765, %v766
    %v872 = vadd.f32 %v871, %v767
    %873 = vadd.xlane.f32.xlu0 %v872
    %v874 = vpop.xlane.xlu0 %873
    %v875 = vadd.f32 %v768, %v769
    %v876 = vadd.f32 %v875, %v770
    %877 = vadd.xlane.f32.xlu0 %v876
    %v878 = vpop.xlane.xlu0 %877
    %v879 = vadd.f32 %v771, %v772
    %v880 = vadd.f32 %v879, %v773
    %881 = vadd.xlane.f32.xlu0 %v880
    %v882 = vpop.xlane.xlu0 %881
    %v883 = vadd.f32 %v774, %v775
    %v884 = vadd.f32 %v883, %v776
    %885 = vadd.xlane.f32.xlu0 %v884
    %v886 = vpop.xlane.xlu0 %885
    %v887 = vadd.f32 %v777, %v778
    %v888 = vadd.f32 %v887, %v779
    %889 = vadd.xlane.f32.xlu0 %v888
    %v890 = vpop.xlane.xlu0 %889
    %v891 = vadd.f32 %v780, %v781
    %v892 = vadd.f32 %v891, %v782
    %893 = vadd.xlane.f32.xlu0 %v892
    %v894 = vpop.xlane.xlu0 %893
    %v895 = vadd.f32 %v783, %v784
    %v896 = vadd.f32 %v895, %v785
    %897 = vadd.xlane.f32.xlu0 %v896
    %v898 = vpop.xlane.xlu0 %897
    %v899 = vadd.f32 %v786, %v787
    %v900 = vadd.f32 %v899, %v788
    %901 = vadd.xlane.f32.xlu0 %v900
    %v902 = vpop.xlane.xlu0 %901
    %v903 = vadd.f32 %v789, %v790
    %v904 = vadd.f32 %v903, %v791
    %905 = vadd.xlane.f32.xlu0 %v904
    %v906 = vpop.xlane.xlu0 %905
    %v907 = vadd.f32 %v792, %v793
    %v908 = vadd.f32 %v907, %v794
    %909 = vadd.xlane.f32.xlu0 %v908
    %v910 = vpop.xlane.xlu0 %909
    %v911 = vadd.f32 %v795, %v796
    %v912 = vadd.f32 %v911, %v797
    %913 = vadd.xlane.f32.xlu0 %v912
    %v914 = vpop.xlane.xlu0 %913
    %v915 = vadd.f32 %v798, %v799
    %v916 = vadd.f32 %v915, %v800
    %917 = vadd.xlane.f32.xlu0 %v916
    %v918 = vpop.xlane.xlu0 %917
    %v919 = vadd.f32 %v801, %v802
    %v920 = vadd.f32 %v919, %v803
    %921 = vadd.xlane.f32.xlu0 %v920
    %v922 = vpop.xlane.xlu0 %921
    %v923 = vadd.f32 %v804, %v805
    %v924 = vadd.f32 %v923, %v806
    %925 = vadd.xlane.f32.xlu0 %v924
    %v926 = vpop.xlane.xlu0 %925
    %v927 = vadd.f32 %v807, %v808
    %v928 = vadd.f32 %v927, %v809
    %929 = vadd.xlane.f32.xlu0 %v928
    %v930 = vpop.xlane.xlu0 %929
    %v931 = vadd.f32 %v810, %v811
    %v932 = vadd.f32 %v931, %v812
    %933 = vadd.xlane.f32.xlu0 %v932
    %v934 = vpop.xlane.xlu0 %933
    %v935 = vadd.f32 %v813, %v814
    %v936 = vadd.f32 %v935, %v815
    %937 = vadd.xlane.f32.xlu0 %v936
    %v938 = vpop.xlane.xlu0 %937
    %v939 = vadd.f32 %v816, %v817
    %v940 = vadd.f32 %v939, %v818
    %941 = vadd.xlane.f32.xlu0 %v940
    %v942 = vpop.xlane.xlu0 %941
    %v943 = vadd.f32 %v819, %v820
    %v944 = vadd.f32 %v943, %v821
    %945 = vadd.xlane.f32.xlu0 %v944
    %v946 = vpop.xlane.xlu0 %945
    %v947 = vadd.f32 %v822, %v823
    %v948 = vadd.f32 %v947, %v824
    %949 = vadd.xlane.f32.xlu0 %v948
    %v950 = vpop.xlane.xlu0 %949
    %v951 = vadd.f32 %v825, %v826
    %v952 = vadd.f32 %v951, %v827
    %953 = vadd.xlane.f32.xlu0 %v952
    %v954 = vpop.xlane.xlu0 %953
    %v955 = vadd.f32 %v828, %v829
    %v956 = vadd.f32 %v955, %v830
    %957 = vadd.xlane.f32.xlu0 %v956
    %v958 = vpop.xlane.xlu0 %957
    %v959 = vmul.f32 %v834, 0.0033333334
    %v960 = vmul.f32 %v838, 0.0033333334
    %v961 = vmul.f32 %v842, 0.0033333334
    %v962 = vmul.f32 %v846, 0.0033333334
    %v963 = vmul.f32 %v850, 0.0033333334
    %v964 = vmul.f32 %v854, 0.0033333334
    %v965 = vmul.f32 %v858, 0.0033333334
    %v966 = vmul.f32 %v862, 0.0033333334
    %v967 = vmul.f32 %v866, 0.0033333334
    %v968 = vmul.f32 %v870, 0.0033333334
    %v969 = vmul.f32 %v874, 0.0033333334
    %v970 = vmul.f32 %v878, 0.0033333334
    %v971 = vmul.f32 %v882, 0.0033333334
    %v972 = vmul.f32 %v886, 0.0033333334
    %v973 = vmul.f32 %v890, 0.0033333334
    %v974 = vmul.f32 %v894, 0.0033333334
    %v975 = vmul.f32 %v898, 0.0033333334
    %v976 = vmul.f32 %v902, 0.0033333334
    %v977 = vmul.f32 %v906, 0.0033333334
    %v978 = vmul.f32 %v910, 0.0033333334
    %v979 = vmul.f32 %v914, 0.0033333334
    %v980 = vmul.f32 %v918, 0.0033333334
    %v981 = vmul.f32 %v922, 0.0033333334
    %v982 = vmul.f32 %v926, 0.0033333334
    %v983 = vmul.f32 %v930, 0.0033333334
    %v984 = vmul.f32 %v934, 0.0033333334
    %v985 = vmul.f32 %v938, 0.0033333334
    %v986 = vmul.f32 %v942, 0.0033333334
    %v987 = vmul.f32 %v946, 0.0033333334
    %v988 = vmul.f32 %v950, 0.0033333334
    %v989 = vmul.f32 %v954, 0.0033333334
    %v990 = vmul.f32 %v958, 0.0033333334
    %v991 = vmul.f32 %v735, %v735
    %v992 = vmul.f32 %v736, %v736
    %v993 = vmul.f32 %v737, %v737
    %v994 = vmul.f32 %v738, %v738
    %v995 = vmul.f32 %v739, %v739
    %v996 = vmul.f32 %v740, %v740
    %v997 = vmul.f32 %v741, %v741
    %v998 = vmul.f32 %v742, %v742
    %v999 = vmul.f32 %v743, %v743
    %v1000 = vmul.f32 %v744, %v744
    %v1001 = vmul.f32 %v745, %v745
    %v1002 = vmul.f32 %v746, %v746
    %v1003 = vmul.f32 %v747, %v747
    %v1004 = vmul.f32 %v748, %v748
    %v1005 = vmul.f32 %v749, %v749
    %v1006 = vmul.f32 %v750, %v750
    %v1007 = vmul.f32 %v751, %v751
    %v1008 = vmul.f32 %v752, %v752
    %v1009 = vmul.f32 %v753, %v753
    %v1010 = vmul.f32 %v754, %v754
    %v1011 = vmul.f32 %v755, %v755
    %v1012 = vmul.f32 %v756, %v756
    %v1013 = vmul.f32 %v757, %v757
    %v1014 = vmul.f32 %v758, %v758
    %v1015 = vmul.f32 %v759, %v759
    %v1016 = vmul.f32 %v760, %v760
    %v1017 = vmul.f32 %v761, %v761
    %v1018 = vmul.f32 %v762, %v762
    %v1019 = vmul.f32 %v763, %v763
    %v1020 = vmul.f32 %v764, %v764
    %v1021 = vmul.f32 %v765, %v765
    %v1022 = vmul.f32 %v766, %v766
    %v1023 = vmul.f32 %v767, %v767
    %v1024 = vmul.f32 %v768, %v768
    %v1025 = vmul.f32 %v769, %v769
    %v1026 = vmul.f32 %v770, %v770
    %v1027 = vmul.f32 %v771, %v771
    %v1028 = vmul.f32 %v772, %v772
    %v1029 = vmul.f32 %v773, %v773
    %v1030 = vmul.f32 %v774, %v774
    %v1031 = vmul.f32 %v775, %v775
    %v1032 = vmul.f32 %v776, %v776
    %v1033 = vmul.f32 %v777, %v777
    %v1034 = vmul.f32 %v778, %v778
    %v1035 = vmul.f32 %v779, %v779
    %v1036 = vmul.f32 %v780, %v780
    %v1037 = vmul.f32 %v781, %v781
    %v1038 = vmul.f32 %v782, %v782
    %v1039 = vmul.f32 %v783, %v783
    %v1040 = vmul.f32 %v784, %v784
    %v1041 = vmul.f32 %v785, %v785
    %v1042 = vmul.f32 %v786, %v786
    %v1043 = vmul.f32 %v787, %v787
    %v1044 = vmul.f32 %v788, %v788
    %v1045 = vmul.f32 %v789, %v789
    %v1046 = vmul.f32 %v790, %v790
    %v1047 = vmul.f32 %v791, %v791
    %v1048 = vmul.f32 %v792, %v792
    %v1049 = vmul.f32 %v793, %v793
    %v1050 = vmul.f32 %v794, %v794
    %v1051 = vmul.f32 %v795, %v795
    %v1052 = vmul.f32 %v796, %v796
    %v1053 = vmul.f32 %v797, %v797
    %v1054 = vmul.f32 %v798, %v798
    %v1055 = vmul.f32 %v799, %v799
    %v1056 = vmul.f32 %v800, %v800
    %v1057 = vmul.f32 %v801, %v801
    %v1058 = vmul.f32 %v802, %v802
    %v1059 = vmul.f32 %v803, %v803
    %v1060 = vmul.f32 %v804, %v804
    %v1061 = vmul.f32 %v805, %v805
    %v1062 = vmul.f32 %v806, %v806
    %v1063 = vmul.f32 %v807, %v807
    %v1064 = vmul.f32 %v808, %v808
    %v1065 = vmul.f32 %v809, %v809
    %v1066 = vmul.f32 %v810, %v810
    %v1067 = vmul.f32 %v811, %v811
    %v1068 = vmul.f32 %v812, %v812
    %v1069 = vmul.f32 %v813, %v813
    %v1070 = vmul.f32 %v814, %v814
    %v1071 = vmul.f32 %v815, %v815
    %v1072 = vmul.f32 %v816, %v816
    %v1073 = vmul.f32 %v817, %v817
    %v1074 = vmul.f32 %v818, %v818
    %v1075 = vmul.f32 %v819, %v819
    %v1076 = vmul.f32 %v820, %v820
    %v1077 = vmul.f32 %v821, %v821
    %v1078 = vmul.f32 %v822, %v822
    %v1079 = vmul.f32 %v823, %v823
    %v1080 = vmul.f32 %v824, %v824
    %v1081 = vmul.f32 %v825, %v825
    %v1082 = vmul.f32 %v826, %v826
    %v1083 = vmul.f32 %v827, %v827
    %v1084 = vmul.f32 %v828, %v828
    %v1085 = vmul.f32 %v829, %v829
    %v1086 = vmul.f32 %v830, %v830
    %v1087 = vadd.f32 %v991, %v992
    %v1088 = vadd.f32 %v1087, %v993
    %1089 = vadd.xlane.f32.xlu0 %v1088
    %v1090 = vpop.xlane.xlu0 %1089
    %v1091 = vadd.f32 %v994, %v995
    %v1092 = vadd.f32 %v1091, %v996
    %1093 = vadd.xlane.f32.xlu0 %v1092
    %v1094 = vpop.xlane.xlu0 %1093
    %v1095 = vadd.f32 %v997, %v998
    %v1096 = vadd.f32 %v1095, %v999
    %1097 = vadd.xlane.f32.xlu0 %v1096
    %v1098 = vpop.xlane.xlu0 %1097
    %v1099 = vadd.f32 %v1000, %v1001
    %v1100 = vadd.f32 %v1099, %v1002
    %1101 = vadd.xlane.f32.xlu0 %v1100
    %v1102 = vpop.xlane.xlu0 %1101
    %v1103 = vadd.f32 %v1003, %v1004
    %v1104 = vadd.f32 %v1103, %v1005
    %1105 = vadd.xlane.f32.xlu0 %v1104
    %v1106 = vpop.xlane.xlu0 %1105
    %v1107 = vadd.f32 %v1006, %v1007
    %v1108 = vadd.f32 %v1107, %v1008
    %1109 = vadd.xlane.f32.xlu0 %v1108
    %v1110 = vpop.xlane.xlu0 %1109
    %v1111 = vadd.f32 %v1009, %v1010
    %v1112 = vadd.f32 %v1111, %v1011
    %1113 = vadd.xlane.f32.xlu0 %v1112
    %v1114 = vpop.xlane.xlu0 %1113
    %v1115 = vadd.f32 %v1012, %v1013
    %v1116 = vadd.f32 %v1115, %v1014
    %1117 = vadd.xlane.f32.xlu0 %v1116
    %v1118 = vpop.xlane.xlu0 %1117
    %v1119 = vadd.f32 %v1015, %v1016
    %v1120 = vadd.f32 %v1119, %v1017
    %1121 = vadd.xlane.f32.xlu0 %v1120
    %v1122 = vpop.xlane.xlu0 %1121
    %v1123 = vadd.f32 %v1018, %v1019
    %v1124 = vadd.f32 %v1123, %v1020
    %1125 = vadd.xlane.f32.xlu0 %v1124
    %v1126 = vpop.xlane.xlu0 %1125
    %v1127 = vadd.f32 %v1021, %v1022
    %v1128 = vadd.f32 %v1127, %v1023
    %1129 = vadd.xlane.f32.xlu0 %v1128
    %v1130 = vpop.xlane.xlu0 %1129
    %v1131 = vadd.f32 %v1024, %v1025
    %v1132 = vadd.f32 %v1131, %v1026
    %1133 = vadd.xlane.f32.xlu0 %v1132
    %v1134 = vpop.xlane.xlu0 %1133
    %v1135 = vadd.f32 %v1027, %v1028
    %v1136 = vadd.f32 %v1135, %v1029
    %1137 = vadd.xlane.f32.xlu0 %v1136
    %v1138 = vpop.xlane.xlu0 %1137
    %v1139 = vadd.f32 %v1030, %v1031
    %v1140 = vadd.f32 %v1139, %v1032
    %1141 = vadd.xlane.f32.xlu0 %v1140
    %v1142 = vpop.xlane.xlu0 %1141
    %v1143 = vadd.f32 %v1033, %v1034
    %v1144 = vadd.f32 %v1143, %v1035
    %1145 = vadd.xlane.f32.xlu0 %v1144
    %v1146 = vpop.xlane.xlu0 %1145
    %v1147 = vadd.f32 %v1036, %v1037
    %v1148 = vadd.f32 %v1147, %v1038
    %1149 = vadd.xlane.f32.xlu0 %v1148
    %v1150 = vpop.xlane.xlu0 %1149
    %v1151 = vadd.f32 %v1039, %v1040
    %v1152 = vadd.f32 %v1151, %v1041
    %1153 = vadd.xlane.f32.xlu0 %v1152
    %v1154 = vpop.xlane.xlu0 %1153
    %v1155 = vadd.f32 %v1042, %v1043
    %v1156 = vadd.f32 %v1155, %v1044
    %1157 = vadd.xlane.f32.xlu0 %v1156
    %v1158 = vpop.xlane.xlu0 %1157
    %v1159 = vadd.f32 %v1045, %v1046
    %v1160 = vadd.f32 %v1159, %v1047
    %1161 = vadd.xlane.f32.xlu0 %v1160
    %v1162 = vpop.xlane.xlu0 %1161
    %v1163 = vadd.f32 %v1048, %v1049
    %v1164 = vadd.f32 %v1163, %v1050
    %1165 = vadd.xlane.f32.xlu0 %v1164
    %v1166 = vpop.xlane.xlu0 %1165
    %v1167 = vadd.f32 %v1051, %v1052
    %v1168 = vadd.f32 %v1167, %v1053
    %1169 = vadd.xlane.f32.xlu0 %v1168
    %v1170 = vpop.xlane.xlu0 %1169
    %v1171 = vadd.f32 %v1054, %v1055
    %v1172 = vadd.f32 %v1171, %v1056
    %1173 = vadd.xlane.f32.xlu0 %v1172
    %v1174 = vpop.xlane.xlu0 %1173
    %v1175 = vadd.f32 %v1057, %v1058
    %v1176 = vadd.f32 %v1175, %v1059
    %1177 = vadd.xlane.f32.xlu0 %v1176
    %v1178 = vpop.xlane.xlu0 %1177
    %v1179 = vadd.f32 %v1060, %v1061
    %v1180 = vadd.f32 %v1179, %v1062
    %1181 = vadd.xlane.f32.xlu0 %v1180
    %v1182 = vpop.xlane.xlu0 %1181
    %v1183 = vadd.f32 %v1063, %v1064
    %v1184 = vadd.f32 %v1183, %v1065
    %1185 = vadd.xlane.f32.xlu0 %v1184
    %v1186 = vpop.xlane.xlu0 %1185
    %v1187 = vadd.f32 %v1066, %v1067
    %v1188 = vadd.f32 %v1187, %v1068
    %1189 = vadd.xlane.f32.xlu0 %v1188
    %v1190 = vpop.xlane.xlu0 %1189
    %v1191 = vadd.f32 %v1069, %v1070
    %v1192 = vadd.f32 %v1191, %v1071
    %1193 = vadd.xlane.f32.xlu0 %v1192
    %v1194 = vpop.xlane.xlu0 %1193
    %v1195 = vadd.f32 %v1072, %v1073
    %v1196 = vadd.f32 %v1195, %v1074
    %1197 = vadd.xlane.f32.xlu0 %v1196
    %v1198 = vpop.xlane.xlu0 %1197
    %v1199 = vadd.f32 %v1075, %v1076
    %v1200 = vadd.f32 %v1199, %v1077
    %1201 = vadd.xlane.f32.xlu0 %v1200
    %v1202 = vpop.xlane.xlu0 %1201
    %v1203 = vadd.f32 %v1078, %v1079
    %v1204 = vadd.f32 %v1203, %v1080
    %1205 = vadd.xlane.f32.xlu0 %v1204
    %v1206 = vpop.xlane.xlu0 %1205
    %v1207 = vadd.f32 %v1081, %v1082
    %v1208 = vadd.f32 %v1207, %v1083
    %1209 = vadd.xlane.f32.xlu0 %v1208
    %v1210 = vpop.xlane.xlu0 %1209
    %v1211 = vadd.f32 %v1084, %v1085
    %v1212 = vadd.f32 %v1211, %v1086
    %1213 = vadd.xlane.f32.xlu0 %v1212
    %v1214 = vpop.xlane.xlu0 %1213
    %v1215 = vmul.f32 %v1090, 0.0033333334
    %v1216 = vmul.f32 %v1094, 0.0033333334
    %v1217 = vmul.f32 %v1098, 0.0033333334
    %v1218 = vmul.f32 %v1102, 0.0033333334
    %v1219 = vmul.f32 %v1106, 0.0033333334
    %v1220 = vmul.f32 %v1110, 0.0033333334
    %v1221 = vmul.f32 %v1114, 0.0033333334
    %v1222 = vmul.f32 %v1118, 0.0033333334
    %v1223 = vmul.f32 %v1122, 0.0033333334
    %v1224 = vmul.f32 %v1126, 0.0033333334
    %v1225 = vmul.f32 %v1130, 0.0033333334
    %v1226 = vmul.f32 %v1134, 0.0033333334
    %v1227 = vmul.f32 %v1138, 0.0033333334
    %v1228 = vmul.f32 %v1142, 0.0033333334
    %v1229 = vmul.f32 %v1146, 0.0033333334
    %v1230 = vmul.f32 %v1150, 0.0033333334
    %v1231 = vmul.f32 %v1154, 0.0033333334
    %v1232 = vmul.f32 %v1158, 0.0033333334
    %v1233 = vmul.f32 %v1162, 0.0033333334
    %v1234 = vmul.f32 %v1166, 0.0033333334
    %v1235 = vmul.f32 %v1170, 0.0033333334
    %v1236 = vmul.f32 %v1174, 0.0033333334
    %v1237 = vmul.f32 %v1178, 0.0033333334
    %v1238 = vmul.f32 %v1182, 0.0033333334
    %v1239 = vmul.f32 %v1186, 0.0033333334
    %v1240 = vmul.f32 %v1190, 0.0033333334
    %v1241 = vmul.f32 %v1194, 0.0033333334
    %v1242 = vmul.f32 %v1198, 0.0033333334
    %v1243 = vmul.f32 %v1202, 0.0033333334
    %v1244 = vmul.f32 %v1206, 0.0033333334
    %v1245 = vmul.f32 %v1210, 0.0033333334
    %v1246 = vmul.f32 %v1214, 0.0033333334
    %v1247 = vmul.f32 %v959, %v959
    %v1248 = vmul.f32 %v960, %v960
    %v1249 = vmul.f32 %v961, %v961
    %v1250 = vmul.f32 %v962, %v962
    %v1251 = vmul.f32 %v963, %v963
    %v1252 = vmul.f32 %v964, %v964
    %v1253 = vmul.f32 %v965, %v965
    %v1254 = vmul.f32 %v966, %v966
    %v1255 = vmul.f32 %v967, %v967
    %v1256 = vmul.f32 %v968, %v968
    %v1257 = vmul.f32 %v969, %v969
    %v1258 = vmul.f32 %v970, %v970
    %v1259 = vmul.f32 %v971, %v971
    %v1260 = vmul.f32 %v972, %v972
    %v1261 = vmul.f32 %v973, %v973
    %v1262 = vmul.f32 %v974, %v974
    %v1263 = vmul.f32 %v975, %v975
    %v1264 = vmul.f32 %v976, %v976
    %v1265 = vmul.f32 %v977, %v977
    %v1266 = vmul.f32 %v978, %v978
    %v1267 = vmul.f32 %v979, %v979
    %v1268 = vmul.f32 %v980, %v980
    %v1269 = vmul.f32 %v981, %v981
    %v1270 = vmul.f32 %v982, %v982
    %v1271 = vmul.f32 %v983, %v983
    %v1272 = vmul.f32 %v984, %v984
    %v1273 = vmul.f32 %v985, %v985
    %v1274 = vmul.f32 %v986, %v986
    %v1275 = vmul.f32 %v987, %v987
    %v1276 = vmul.f32 %v988, %v988
    %v1277 = vmul.f32 %v989, %v989
    %v1278 = vmul.f32 %v990, %v990
    %v1279 = vsub.f32 %v1215, %v1247
    %v1280 = vsub.f32 %v1216, %v1248
    %v1281 = vsub.f32 %v1217, %v1249
    %v1282 = vsub.f32 %v1218, %v1250
    %v1283 = vsub.f32 %v1219, %v1251
    %v1284 = vsub.f32 %v1220, %v1252
    %v1285 = vsub.f32 %v1221, %v1253
    %v1286 = vsub.f32 %v1222, %v1254
    %v1287 = vsub.f32 %v1223, %v1255
    %v1288 = vsub.f32 %v1224, %v1256
    %v1289 = vsub.f32 %v1225, %v1257
    %v1290 = vsub.f32 %v1226, %v1258
    %v1291 = vsub.f32 %v1227, %v1259
    %v1292 = vsub.f32 %v1228, %v1260
    %v1293 = vsub.f32 %v1229, %v1261
    %v1294 = vsub.f32 %v1230, %v1262
    %v1295 = vsub.f32 %v1231, %v1263
    %v1296 = vsub.f32 %v1232, %v1264
    %v1297 = vsub.f32 %v1233, %v1265
    %v1298 = vsub.f32 %v1234, %v1266
    %v1299 = vsub.f32 %v1235, %v1267
    %v1300 = vsub.f32 %v1236, %v1268
    %v1301 = vsub.f32 %v1237, %v1269
    %v1302 = vsub.f32 %v1238, %v1270
    %v1303 = vsub.f32 %v1239, %v1271
    %v1304 = vsub.f32 %v1240, %v1272
    %v1305 = vsub.f32 %v1241, %v1273
    %v1306 = vsub.f32 %v1242, %v1274
    %v1307 = vsub.f32 %v1243, %v1275
    %v1308 = vsub.f32 %v1244, %v1276
    %v1309 = vsub.f32 %v1245, %v1277
    %v1310 = vsub.f32 %v1246, %v1278
    %v1311 = vmax.f32 %v1279, 0.0
    %v1312 = vmax.f32 %v1280, 0.0
    %v1313 = vmax.f32 %v1281, 0.0
    %v1314 = vmax.f32 %v1282, 0.0
    %v1315 = vmax.f32 %v1283, 0.0
    %v1316 = vmax.f32 %v1284, 0.0
    %v1317 = vmax.f32 %v1285, 0.0
    %v1318 = vmax.f32 %v1286, 0.0
    %v1319 = vmax.f32 %v1287, 0.0
    %v1320 = vmax.f32 %v1288, 0.0
    %v1321 = vmax.f32 %v1289, 0.0
    %v1322 = vmax.f32 %v1290, 0.0
    %v1323 = vmax.f32 %v1291, 0.0
    %v1324 = vmax.f32 %v1292, 0.0
    %v1325 = vmax.f32 %v1293, 0.0
    %v1326 = vmax.f32 %v1294, 0.0
    %v1327 = vmax.f32 %v1295, 0.0
    %v1328 = vmax.f32 %v1296, 0.0
    %v1329 = vmax.f32 %v1297, 0.0
    %v1330 = vmax.f32 %v1298, 0.0
    %v1331 = vmax.f32 %v1299, 0.0
    %v1332 = vmax.f32 %v1300, 0.0
    %v1333 = vmax.f32 %v1301, 0.0
    %v1334 = vmax.f32 %v1302, 0.0
    %v1335 = vmax.f32 %v1303, 0.0
    %v1336 = vmax.f32 %v1304, 0.0
    %v1337 = vmax.f32 %v1305, 0.0
    %v1338 = vmax.f32 %v1306, 0.0
    %v1339 = vmax.f32 %v1307, 0.0
    %v1340 = vmax.f32 %v1308, 0.0
    %v1341 = vmax.f32 %v1309, 0.0
    %v1342 = vmax.f32 %v1310, 0.0
    %v1343 = vld [vmem:[%s2] sm:$0xff]
    %v1344 = vld [vmem:[%s2 + $0x8] sm:$0xff]
    %v1345 = vld [vmem:[%s2 + $0x10] sm:$0xff]
    %v1346 = vld [vmem:[%s2 + $0x18] sm:$0xff]
    %v1347 = vld [vmem:[%s2 + $0x20] sm:$0xff]
    %v1348 = vld [vmem:[%s2 + $0x28] sm:$0xff]
    %v1349 = vld [vmem:[%s2 + $0x30] sm:$0xff]
    %v1350 = vld [vmem:[%s2 + $0x38] sm:$0xff]
    %v1351 = vld [vmem:[%s2 + $0x40] sm:$0xff]
    %v1352 = vld [vmem:[%s2 + $0x48] sm:$0xff]
    %v1353 = vld [vmem:[%s2 + $0x50] sm:$0xff]
    %v1354 = vld [vmem:[%s2 + $0x58] sm:$0xff]
    %v1355 = vld [vmem:[%s2 + $0x60] sm:$0xff]
    %v1356 = vld [vmem:[%s2 + $0x68] sm:$0xff]
    %v1357 = vld [vmem:[%s2 + $0x70] sm:$0xff]
    %v1358 = vld [vmem:[%s2 + $0x78] sm:$0xff]
    %v1359 = vld [vmem:[%s2 + $0x80] sm:$0xff]
    %v1360 = vld [vmem:[%s2 + $0x88] sm:$0xff]
    %v1361 = vld [vmem:[%s2 + $0x90] sm:$0xff]
    %v1362 = vld [vmem:[%s2 + $0x98] sm:$0xff]
    %v1363 = vld [vmem:[%s2 + $0xa0] sm:$0xff]
    %v1364 = vld [vmem:[%s2 + $0xa8] sm:$0xff]
    %v1365 = vld [vmem:[%s2 + $0xb0] sm:$0xff]
    %v1366 = vld [vmem:[%s2 + $0xb8] sm:$0xff]
    %v1367 = vld [vmem:[%s2 + $0xc0] sm:$0xff]
    %v1368 = vld [vmem:[%s2 + $0xc8] sm:$0xff]
    %v1369 = vld [vmem:[%s2 + $0xd0] sm:$0xff]
    %v1370 = vld [vmem:[%s2 + $0xd8] sm:$0xff]
    %v1371 = vld [vmem:[%s2 + $0xe0] sm:$0xff]
    %v1372 = vld [vmem:[%s2 + $0xe8] sm:$0xff]
    %v1373 = vld [vmem:[%s2 + $0xf0] sm:$0xff]
    %v1374 = vld [vmem:[%s2 + $0xf8] sm:$0xff]
    %v1375 = vadd.f32 %v1311, 1e-05
    %v1376 = vadd.f32 %v1312, 1e-05
    %v1377 = vadd.f32 %v1313, 1e-05
    %v1378 = vadd.f32 %v1314, 1e-05
    %v1379 = vadd.f32 %v1315, 1e-05
    %v1380 = vadd.f32 %v1316, 1e-05
    %v1381 = vadd.f32 %v1317, 1e-05
    %v1382 = vadd.f32 %v1318, 1e-05
    %v1383 = vadd.f32 %v1319, 1e-05
    %v1384 = vadd.f32 %v1320, 1e-05
    %v1385 = vadd.f32 %v1321, 1e-05
    %v1386 = vadd.f32 %v1322, 1e-05
    %v1387 = vadd.f32 %v1323, 1e-05
    %v1388 = vadd.f32 %v1324, 1e-05
    %v1389 = vadd.f32 %v1325, 1e-05
    %v1390 = vadd.f32 %v1326, 1e-05
    %v1391 = vadd.f32 %v1327, 1e-05
    %v1392 = vadd.f32 %v1328, 1e-05
    %v1393 = vadd.f32 %v1329, 1e-05
    %v1394 = vadd.f32 %v1330, 1e-05
    %v1395 = vadd.f32 %v1331, 1e-05
    %v1396 = vadd.f32 %v1332, 1e-05
    %v1397 = vadd.f32 %v1333, 1e-05
    %v1398 = vadd.f32 %v1334, 1e-05
    %v1399 = vadd.f32 %v1335, 1e-05
    %v1400 = vadd.f32 %v1336, 1e-05
    %v1401 = vadd.f32 %v1337, 1e-05
    %v1402 = vadd.f32 %v1338, 1e-05
    %v1403 = vadd.f32 %v1339, 1e-05
    %v1404 = vadd.f32 %v1340, 1e-05
    %v1405 = vadd.f32 %v1341, 1e-05
    %v1406 = vadd.f32 %v1342, 1e-05
    %v1407 = vrsqrt.pop %v1375
    %v1408 = vrsqrt.pop %v1376
    %v1409 = vrsqrt.pop %v1377
    %v1410 = vrsqrt.pop %v1378
    %v1411 = vrsqrt.pop %v1379
    %v1412 = vrsqrt.pop %v1380
    %v1413 = vrsqrt.pop %v1381
    %v1414 = vrsqrt.pop %v1382
    %v1415 = vrsqrt.pop %v1383
    %v1416 = vrsqrt.pop %v1384
    %v1417 = vrsqrt.pop %v1385
    %v1418 = vrsqrt.pop %v1386
    %v1419 = vrsqrt.pop %v1387
    %v1420 = vrsqrt.pop %v1388
    %v1421 = vrsqrt.pop %v1389
    %v1422 = vrsqrt.pop %v1390
    %v1423 = vrsqrt.pop %v1391
    %v1424 = vrsqrt.pop %v1392
    %v1425 = vrsqrt.pop %v1393
    %v1426 = vrsqrt.pop %v1394
    %v1427 = vrsqrt.pop %v1395
    %v1428 = vrsqrt.pop %v1396
    %v1429 = vrsqrt.pop %v1397
    %v1430 = vrsqrt.pop %v1398
    %v1431 = vrsqrt.pop %v1399
    %v1432 = vrsqrt.pop %v1400
    %v1433 = vrsqrt.pop %v1401
    %v1434 = vrsqrt.pop %v1402
    %v1435 = vrsqrt.pop %v1403
    %v1436 = vrsqrt.pop %v1404
    %v1437 = vrsqrt.pop %v1405
    %v1438 = vrsqrt.pop %v1406
    %v1439 = vmul.f32 %v1343, %v1407
    %v1440 = vmul.f32 %v1344, %v1408
    %v1441 = vmul.f32 %v1345, %v1409
    %v1442 = vmul.f32 %v1346, %v1410
    %v1443 = vmul.f32 %v1347, %v1411
    %v1444 = vmul.f32 %v1348, %v1412
    %v1445 = vmul.f32 %v1349, %v1413
    %v1446 = vmul.f32 %v1350, %v1414
    %v1447 = vmul.f32 %v1351, %v1415
    %v1448 = vmul.f32 %v1352, %v1416
    %v1449 = vmul.f32 %v1353, %v1417
    %v1450 = vmul.f32 %v1354, %v1418
    %v1451 = vmul.f32 %v1355, %v1419
    %v1452 = vmul.f32 %v1356, %v1420
    %v1453 = vmul.f32 %v1357, %v1421
    %v1454 = vmul.f32 %v1358, %v1422
    %v1455 = vmul.f32 %v1359, %v1423
    %v1456 = vmul.f32 %v1360, %v1424
    %v1457 = vmul.f32 %v1361, %v1425
    %v1458 = vmul.f32 %v1362, %v1426
    %v1459 = vmul.f32 %v1363, %v1427
    %v1460 = vmul.f32 %v1364, %v1428
    %v1461 = vmul.f32 %v1365, %v1429
    %v1462 = vmul.f32 %v1366, %v1430
    %v1463 = vmul.f32 %v1367, %v1431
    %v1464 = vmul.f32 %v1368, %v1432
    %v1465 = vmul.f32 %v1369, %v1433
    %v1466 = vmul.f32 %v1370, %v1434
    %v1467 = vmul.f32 %v1371, %v1435
    %v1468 = vmul.f32 %v1372, %v1436
    %v1469 = vmul.f32 %v1373, %v1437
    %v1470 = vmul.f32 %v1374, %v1438
    %v1471 = vld [vmem:[%s3] sm:$0xff]
    %v1472 = vld [vmem:[%s3 + $0x8] sm:$0xff]
    %v1473 = vld [vmem:[%s3 + $0x10] sm:$0xff]
    %v1474 = vld [vmem:[%s3 + $0x18] sm:$0xff]
    %v1475 = vld [vmem:[%s3 + $0x20] sm:$0xff]
    %v1476 = vld [vmem:[%s3 + $0x28] sm:$0xff]
    %v1477 = vld [vmem:[%s3 + $0x30] sm:$0xff]
    %v1478 = vld [vmem:[%s3 + $0x38] sm:$0xff]
    %v1479 = vld [vmem:[%s3 + $0x40] sm:$0xff]
    %v1480 = vld [vmem:[%s3 + $0x48] sm:$0xff]
    %v1481 = vld [vmem:[%s3 + $0x50] sm:$0xff]
    %v1482 = vld [vmem:[%s3 + $0x58] sm:$0xff]
    %v1483 = vld [vmem:[%s3 + $0x60] sm:$0xff]
    %v1484 = vld [vmem:[%s3 + $0x68] sm:$0xff]
    %v1485 = vld [vmem:[%s3 + $0x70] sm:$0xff]
    %v1486 = vld [vmem:[%s3 + $0x78] sm:$0xff]
    %v1487 = vld [vmem:[%s3 + $0x80] sm:$0xff]
    %v1488 = vld [vmem:[%s3 + $0x88] sm:$0xff]
    %v1489 = vld [vmem:[%s3 + $0x90] sm:$0xff]
    %v1490 = vld [vmem:[%s3 + $0x98] sm:$0xff]
    %v1491 = vld [vmem:[%s3 + $0xa0] sm:$0xff]
    %v1492 = vld [vmem:[%s3 + $0xa8] sm:$0xff]
    %v1493 = vld [vmem:[%s3 + $0xb0] sm:$0xff]
    %v1494 = vld [vmem:[%s3 + $0xb8] sm:$0xff]
    %v1495 = vld [vmem:[%s3 + $0xc0] sm:$0xff]
    %v1496 = vld [vmem:[%s3 + $0xc8] sm:$0xff]
    %v1497 = vld [vmem:[%s3 + $0xd0] sm:$0xff]
    %v1498 = vld [vmem:[%s3 + $0xd8] sm:$0xff]
    %v1499 = vld [vmem:[%s3 + $0xe0] sm:$0xff]
    %v1500 = vld [vmem:[%s3 + $0xe8] sm:$0xff]
    %v1501 = vld [vmem:[%s3 + $0xf0] sm:$0xff]
    %v1502 = vld [vmem:[%s3 + $0xf8] sm:$0xff]
    %v1503 = vmul.f32 %v959, %v1439
    %v1504 = vmul.f32 %v960, %v1440
    %v1505 = vmul.f32 %v961, %v1441
    %v1506 = vmul.f32 %v962, %v1442
    %v1507 = vmul.f32 %v963, %v1443
    %v1508 = vmul.f32 %v964, %v1444
    %v1509 = vmul.f32 %v965, %v1445
    %v1510 = vmul.f32 %v966, %v1446
    %v1511 = vmul.f32 %v967, %v1447
    %v1512 = vmul.f32 %v968, %v1448
    %v1513 = vmul.f32 %v969, %v1449
    %v1514 = vmul.f32 %v970, %v1450
    %v1515 = vmul.f32 %v971, %v1451
    %v1516 = vmul.f32 %v972, %v1452
    %v1517 = vmul.f32 %v973, %v1453
    %v1518 = vmul.f32 %v974, %v1454
    %v1519 = vmul.f32 %v975, %v1455
    %v1520 = vmul.f32 %v976, %v1456
    %v1521 = vmul.f32 %v977, %v1457
    %v1522 = vmul.f32 %v978, %v1458
    %v1523 = vmul.f32 %v979, %v1459
    %v1524 = vmul.f32 %v980, %v1460
    %v1525 = vmul.f32 %v981, %v1461
    %v1526 = vmul.f32 %v982, %v1462
    %v1527 = vmul.f32 %v983, %v1463
    %v1528 = vmul.f32 %v984, %v1464
    %v1529 = vmul.f32 %v985, %v1465
    %v1530 = vmul.f32 %v986, %v1466
    %v1531 = vmul.f32 %v987, %v1467
    %v1532 = vmul.f32 %v988, %v1468
    %v1533 = vmul.f32 %v989, %v1469
    %v1534 = vmul.f32 %v990, %v1470
    %v1535 = vsub.f32 %v1471, %v1503
    %v1536 = vsub.f32 %v1472, %v1504
    %v1537 = vsub.f32 %v1473, %v1505
    %v1538 = vsub.f32 %v1474, %v1506
    %v1539 = vsub.f32 %v1475, %v1507
    %v1540 = vsub.f32 %v1476, %v1508
    %v1541 = vsub.f32 %v1477, %v1509
    %v1542 = vsub.f32 %v1478, %v1510
    %v1543 = vsub.f32 %v1479, %v1511
    %v1544 = vsub.f32 %v1480, %v1512
    %v1545 = vsub.f32 %v1481, %v1513
    %v1546 = vsub.f32 %v1482, %v1514
    %v1547 = vsub.f32 %v1483, %v1515
    %v1548 = vsub.f32 %v1484, %v1516
    %v1549 = vsub.f32 %v1485, %v1517
    %v1550 = vsub.f32 %v1486, %v1518
    %v1551 = vsub.f32 %v1487, %v1519
    %v1552 = vsub.f32 %v1488, %v1520
    %v1553 = vsub.f32 %v1489, %v1521
    %v1554 = vsub.f32 %v1490, %v1522
    %v1555 = vsub.f32 %v1491, %v1523
    %v1556 = vsub.f32 %v1492, %v1524
    %v1557 = vsub.f32 %v1493, %v1525
    %v1558 = vsub.f32 %v1494, %v1526
    %v1559 = vsub.f32 %v1495, %v1527
    %v1560 = vsub.f32 %v1496, %v1528
    %v1561 = vsub.f32 %v1497, %v1529
    %v1562 = vsub.f32 %v1498, %v1530
    %v1563 = vsub.f32 %v1499, %v1531
    %v1564 = vsub.f32 %v1500, %v1532
    %v1565 = vsub.f32 %v1501, %v1533
    %v1566 = vsub.f32 %v1502, %v1534
    %1568 = vset.pattern.permute.xlu0 0
    %1569 = vperm.xlu0 %1568, %v1439
    %v1570 = vpop.permute.xlu0 %1569
    %1573 = vset.pattern.permute.xlu0 0
    %1574 = vperm.xlu0 %1573, %v1440
    %v1575 = vpop.permute.xlu0 %1574
    %1578 = vset.pattern.permute.xlu0 0
    %1579 = vperm.xlu0 %1578, %v1441
    %v1580 = vpop.permute.xlu0 %1579
    %1583 = vset.pattern.permute.xlu0 0
    %1584 = vperm.xlu0 %1583, %v1442
    %v1585 = vpop.permute.xlu0 %1584
    %1588 = vset.pattern.permute.xlu0 0
    %1589 = vperm.xlu0 %1588, %v1443
    %v1590 = vpop.permute.xlu0 %1589
    %1593 = vset.pattern.permute.xlu0 0
    %1594 = vperm.xlu0 %1593, %v1444
    %v1595 = vpop.permute.xlu0 %1594
    %1598 = vset.pattern.permute.xlu0 0
    %1599 = vperm.xlu0 %1598, %v1445
    %v1600 = vpop.permute.xlu0 %1599
    %1603 = vset.pattern.permute.xlu0 0
    %1604 = vperm.xlu0 %1603, %v1446
    %v1605 = vpop.permute.xlu0 %1604
    %1608 = vset.pattern.permute.xlu0 0
    %1609 = vperm.xlu0 %1608, %v1447
    %v1610 = vpop.permute.xlu0 %1609
    %1613 = vset.pattern.permute.xlu0 0
    %1614 = vperm.xlu0 %1613, %v1448
    %v1615 = vpop.permute.xlu0 %1614
    %1618 = vset.pattern.permute.xlu0 0
    %1619 = vperm.xlu0 %1618, %v1449
    %v1620 = vpop.permute.xlu0 %1619
    %1623 = vset.pattern.permute.xlu0 0
    %1624 = vperm.xlu0 %1623, %v1450
    %v1625 = vpop.permute.xlu0 %1624
    %1628 = vset.pattern.permute.xlu0 0
    %1629 = vperm.xlu0 %1628, %v1451
    %v1630 = vpop.permute.xlu0 %1629
    %1633 = vset.pattern.permute.xlu0 0
    %1634 = vperm.xlu0 %1633, %v1452
    %v1635 = vpop.permute.xlu0 %1634
    %1638 = vset.pattern.permute.xlu0 0
    %1639 = vperm.xlu0 %1638, %v1453
    %v1640 = vpop.permute.xlu0 %1639
    %1643 = vset.pattern.permute.xlu0 0
    %1644 = vperm.xlu0 %1643, %v1454
    %v1645 = vpop.permute.xlu0 %1644
    %1648 = vset.pattern.permute.xlu0 0
    %1649 = vperm.xlu0 %1648, %v1455
    %v1650 = vpop.permute.xlu0 %1649
    %1653 = vset.pattern.permute.xlu0 0
    %1654 = vperm.xlu0 %1653, %v1456
    %v1655 = vpop.permute.xlu0 %1654
    %1658 = vset.pattern.permute.xlu0 0
    %1659 = vperm.xlu0 %1658, %v1457
    %v1660 = vpop.permute.xlu0 %1659
    %1663 = vset.pattern.permute.xlu0 0
    %1664 = vperm.xlu0 %1663, %v1458
    %v1665 = vpop.permute.xlu0 %1664
    %1668 = vset.pattern.permute.xlu0 0
    %1669 = vperm.xlu0 %1668, %v1459
    %v1670 = vpop.permute.xlu0 %1669
    %1673 = vset.pattern.permute.xlu0 0
    %1674 = vperm.xlu0 %1673, %v1460
    %v1675 = vpop.permute.xlu0 %1674
    %1678 = vset.pattern.permute.xlu0 0
    %1679 = vperm.xlu0 %1678, %v1461
    %v1680 = vpop.permute.xlu0 %1679
    %1683 = vset.pattern.permute.xlu0 0
    %1684 = vperm.xlu0 %1683, %v1462
    %v1685 = vpop.permute.xlu0 %1684
    %1688 = vset.pattern.permute.xlu0 0
    %1689 = vperm.xlu0 %1688, %v1463
    %v1690 = vpop.permute.xlu0 %1689
    %1693 = vset.pattern.permute.xlu0 0
    %1694 = vperm.xlu0 %1693, %v1464
    %v1695 = vpop.permute.xlu0 %1694
    %1698 = vset.pattern.permute.xlu0 0
    %1699 = vperm.xlu0 %1698, %v1465
    %v1700 = vpop.permute.xlu0 %1699
    %1703 = vset.pattern.permute.xlu0 0
    %1704 = vperm.xlu0 %1703, %v1466
    %v1705 = vpop.permute.xlu0 %1704
    %1708 = vset.pattern.permute.xlu0 0
    %1709 = vperm.xlu0 %1708, %v1467
    %v1710 = vpop.permute.xlu0 %1709
    %1713 = vset.pattern.permute.xlu0 0
    %1714 = vperm.xlu0 %1713, %v1468
    %v1715 = vpop.permute.xlu0 %1714
    %1718 = vset.pattern.permute.xlu0 0
    %1719 = vperm.xlu0 %1718, %v1469
    %v1720 = vpop.permute.xlu0 %1719
    %1723 = vset.pattern.permute.xlu0 0
    %1724 = vperm.xlu0 %1723, %v1470
    %v1725 = vpop.permute.xlu0 %1724
    %v1727 = vmul.f32 %v735, %v1570
    %v1728 = vmul.f32 %v736, %v1570
    %v1729 = vmul.f32 %v737, %v1570
    %v1730 = vmul.f32 %v738, %v1575
    %v1731 = vmul.f32 %v739, %v1575
    %v1732 = vmul.f32 %v740, %v1575
    %v1733 = vmul.f32 %v741, %v1580
    %v1734 = vmul.f32 %v742, %v1580
    %v1735 = vmul.f32 %v743, %v1580
    %v1736 = vmul.f32 %v744, %v1585
    %v1737 = vmul.f32 %v745, %v1585
    %v1738 = vmul.f32 %v746, %v1585
    %v1739 = vmul.f32 %v747, %v1590
    %v1740 = vmul.f32 %v748, %v1590
    %v1741 = vmul.f32 %v749, %v1590
    %v1742 = vmul.f32 %v750, %v1595
    %v1743 = vmul.f32 %v751, %v1595
    %v1744 = vmul.f32 %v752, %v1595
    %v1745 = vmul.f32 %v753, %v1600
    %v1746 = vmul.f32 %v754, %v1600
    %v1747 = vmul.f32 %v755, %v1600
    %v1748 = vmul.f32 %v756, %v1605
    %v1749 = vmul.f32 %v757, %v1605
    %v1750 = vmul.f32 %v758, %v1605
    %v1751 = vmul.f32 %v759, %v1610
    %v1752 = vmul.f32 %v760, %v1610
    %v1753 = vmul.f32 %v761, %v1610
    %v1754 = vmul.f32 %v762, %v1615
    %v1755 = vmul.f32 %v763, %v1615
    %v1756 = vmul.f32 %v764, %v1615
    %v1757 = vmul.f32 %v765, %v1620
    %v1758 = vmul.f32 %v766, %v1620
    %v1759 = vmul.f32 %v767, %v1620
    %v1760 = vmul.f32 %v768, %v1625
    %v1761 = vmul.f32 %v769, %v1625
    %v1762 = vmul.f32 %v770, %v1625
    %v1763 = vmul.f32 %v771, %v1630
    %v1764 = vmul.f32 %v772, %v1630
    %v1765 = vmul.f32 %v773, %v1630
    %v1766 = vmul.f32 %v774, %v1635
    %v1767 = vmul.f32 %v775, %v1635
    %v1768 = vmul.f32 %v776, %v1635
    %v1769 = vmul.f32 %v777, %v1640
    %v1770 = vmul.f32 %v778, %v1640
    %v1771 = vmul.f32 %v779, %v1640
    %v1772 = vmul.f32 %v780, %v1645
    %v1773 = vmul.f32 %v781, %v1645
    %v1774 = vmul.f32 %v782, %v1645
    %v1775 = vmul.f32 %v783, %v1650
    %v1776 = vmul.f32 %v784, %v1650
    %v1777 = vmul.f32 %v785, %v1650
    %v1778 = vmul.f32 %v786, %v1655
    %v1779 = vmul.f32 %v787, %v1655
    %v1780 = vmul.f32 %v788, %v1655
    %v1781 = vmul.f32 %v789, %v1660
    %v1782 = vmul.f32 %v790, %v1660
    %v1783 = vmul.f32 %v791, %v1660
    %v1784 = vmul.f32 %v792, %v1665
    %v1785 = vmul.f32 %v793, %v1665
    %v1786 = vmul.f32 %v794, %v1665
    %v1787 = vmul.f32 %v795, %v1670
    %v1788 = vmul.f32 %v796, %v1670
    %v1789 = vmul.f32 %v797, %v1670
    %v1790 = vmul.f32 %v798, %v1675
    %v1791 = vmul.f32 %v799, %v1675
    %v1792 = vmul.f32 %v800, %v1675
    %v1793 = vmul.f32 %v801, %v1680
    %v1794 = vmul.f32 %v802, %v1680
    %v1795 = vmul.f32 %v803, %v1680
    %v1796 = vmul.f32 %v804, %v1685
    %v1797 = vmul.f32 %v805, %v1685
    %v1798 = vmul.f32 %v806, %v1685
    %v1799 = vmul.f32 %v807, %v1690
    %v1800 = vmul.f32 %v808, %v1690
    %v1801 = vmul.f32 %v809, %v1690
    %v1802 = vmul.f32 %v810, %v1695
    %v1803 = vmul.f32 %v811, %v1695
    %v1804 = vmul.f32 %v812, %v1695
    %v1805 = vmul.f32 %v813, %v1700
    %v1806 = vmul.f32 %v814, %v1700
    %v1807 = vmul.f32 %v815, %v1700
    %v1808 = vmul.f32 %v816, %v1705
    %v1809 = vmul.f32 %v817, %v1705
    %v1810 = vmul.f32 %v818, %v1705
    %v1811 = vmul.f32 %v819, %v1710
    %v1812 = vmul.f32 %v820, %v1710
    %v1813 = vmul.f32 %v821, %v1710
    %v1814 = vmul.f32 %v822, %v1715
    %v1815 = vmul.f32 %v823, %v1715
    %v1816 = vmul.f32 %v824, %v1715
    %v1817 = vmul.f32 %v825, %v1720
    %v1818 = vmul.f32 %v826, %v1720
    %v1819 = vmul.f32 %v827, %v1720
    %v1820 = vmul.f32 %v828, %v1725
    %v1821 = vmul.f32 %v829, %v1725
    %v1822 = vmul.f32 %v830, %v1725
    %1824 = vset.pattern.permute.xlu0 0
    %1825 = vperm.xlu0 %1824, %v1535
    %v1826 = vpop.permute.xlu0 %1825
    %1829 = vset.pattern.permute.xlu0 0
    %1830 = vperm.xlu0 %1829, %v1536
    %v1831 = vpop.permute.xlu0 %1830
    %1834 = vset.pattern.permute.xlu0 0
    %1835 = vperm.xlu0 %1834, %v1537
    %v1836 = vpop.permute.xlu0 %1835
    %1839 = vset.pattern.permute.xlu0 0
    %1840 = vperm.xlu0 %1839, %v1538
    %v1841 = vpop.permute.xlu0 %1840
    %1844 = vset.pattern.permute.xlu0 0
    %1845 = vperm.xlu0 %1844, %v1539
    %v1846 = vpop.permute.xlu0 %1845
    %1849 = vset.pattern.permute.xlu0 0
    %1850 = vperm.xlu0 %1849, %v1540
    %v1851 = vpop.permute.xlu0 %1850
    %1854 = vset.pattern.permute.xlu0 0
    %1855 = vperm.xlu0 %1854, %v1541
    %v1856 = vpop.permute.xlu0 %1855
    %1859 = vset.pattern.permute.xlu0 0
    %1860 = vperm.xlu0 %1859, %v1542
    %v1861 = vpop.permute.xlu0 %1860
    %1864 = vset.pattern.permute.xlu0 0
    %1865 = vperm.xlu0 %1864, %v1543
    %v1866 = vpop.permute.xlu0 %1865
    %1869 = vset.pattern.permute.xlu0 0
    %1870 = vperm.xlu0 %1869, %v1544
    %v1871 = vpop.permute.xlu0 %1870
    %1874 = vset.pattern.permute.xlu0 0
    %1875 = vperm.xlu0 %1874, %v1545
    %v1876 = vpop.permute.xlu0 %1875
    %1879 = vset.pattern.permute.xlu0 0
    %1880 = vperm.xlu0 %1879, %v1546
    %v1881 = vpop.permute.xlu0 %1880
    %1884 = vset.pattern.permute.xlu0 0
    %1885 = vperm.xlu0 %1884, %v1547
    %v1886 = vpop.permute.xlu0 %1885
    %1889 = vset.pattern.permute.xlu0 0
    %1890 = vperm.xlu0 %1889, %v1548
    %v1891 = vpop.permute.xlu0 %1890
    %1894 = vset.pattern.permute.xlu0 0
    %1895 = vperm.xlu0 %1894, %v1549
    %v1896 = vpop.permute.xlu0 %1895
    %1899 = vset.pattern.permute.xlu0 0
    %1900 = vperm.xlu0 %1899, %v1550
    %v1901 = vpop.permute.xlu0 %1900
    %1904 = vset.pattern.permute.xlu0 0
    %1905 = vperm.xlu0 %1904, %v1551
    %v1906 = vpop.permute.xlu0 %1905
    %1909 = vset.pattern.permute.xlu0 0
    %1910 = vperm.xlu0 %1909, %v1552
    %v1911 = vpop.permute.xlu0 %1910
    %1914 = vset.pattern.permute.xlu0 0
    %1915 = vperm.xlu0 %1914, %v1553
    %v1916 = vpop.permute.xlu0 %1915
    %1919 = vset.pattern.permute.xlu0 0
    %1920 = vperm.xlu0 %1919, %v1554
    %v1921 = vpop.permute.xlu0 %1920
    %1924 = vset.pattern.permute.xlu0 0
    %1925 = vperm.xlu0 %1924, %v1555
    %v1926 = vpop.permute.xlu0 %1925
    %1929 = vset.pattern.permute.xlu0 0
    %1930 = vperm.xlu0 %1929, %v1556
    %v1931 = vpop.permute.xlu0 %1930
    %1934 = vset.pattern.permute.xlu0 0
    %1935 = vperm.xlu0 %1934, %v1557
    %v1936 = vpop.permute.xlu0 %1935
    %1939 = vset.pattern.permute.xlu0 0
    %1940 = vperm.xlu0 %1939, %v1558
    %v1941 = vpop.permute.xlu0 %1940
    %1944 = vset.pattern.permute.xlu0 0
    %1945 = vperm.xlu0 %1944, %v1559
    %v1946 = vpop.permute.xlu0 %1945
    %1949 = vset.pattern.permute.xlu0 0
    %1950 = vperm.xlu0 %1949, %v1560
    %v1951 = vpop.permute.xlu0 %1950
    %1954 = vset.pattern.permute.xlu0 0
    %1955 = vperm.xlu0 %1954, %v1561
    %v1956 = vpop.permute.xlu0 %1955
    %1959 = vset.pattern.permute.xlu0 0
    %1960 = vperm.xlu0 %1959, %v1562
    %v1961 = vpop.permute.xlu0 %1960
    %1964 = vset.pattern.permute.xlu0 0
    %1965 = vperm.xlu0 %1964, %v1563
    %v1966 = vpop.permute.xlu0 %1965
    %1969 = vset.pattern.permute.xlu0 0
    %1970 = vperm.xlu0 %1969, %v1564
    %v1971 = vpop.permute.xlu0 %1970
    %1974 = vset.pattern.permute.xlu0 0
    %1975 = vperm.xlu0 %1974, %v1565
    %v1976 = vpop.permute.xlu0 %1975
    %1979 = vset.pattern.permute.xlu0 0
    %1980 = vperm.xlu0 %1979, %v1566
    %v1981 = vpop.permute.xlu0 %1980
    %v1983 = vadd.f32 %v1727, %v1826
    %v1984 = vadd.f32 %v1728, %v1826
    %v1985 = vadd.f32 %v1729, %v1826
    %v1986 = vadd.f32 %v1730, %v1831
    %v1987 = vadd.f32 %v1731, %v1831
    %v1988 = vadd.f32 %v1732, %v1831
    %v1989 = vadd.f32 %v1733, %v1836
    %v1990 = vadd.f32 %v1734, %v1836
    %v1991 = vadd.f32 %v1735, %v1836
    %v1992 = vadd.f32 %v1736, %v1841
    %v1993 = vadd.f32 %v1737, %v1841
    %v1994 = vadd.f32 %v1738, %v1841
    %v1995 = vadd.f32 %v1739, %v1846
    %v1996 = vadd.f32 %v1740, %v1846
    %v1997 = vadd.f32 %v1741, %v1846
    %v1998 = vadd.f32 %v1742, %v1851
    %v1999 = vadd.f32 %v1743, %v1851
    %v2000 = vadd.f32 %v1744, %v1851
    %v2001 = vadd.f32 %v1745, %v1856
    %v2002 = vadd.f32 %v1746, %v1856
    %v2003 = vadd.f32 %v1747, %v1856
    %v2004 = vadd.f32 %v1748, %v1861
    %v2005 = vadd.f32 %v1749, %v1861
    %v2006 = vadd.f32 %v1750, %v1861
    %v2007 = vadd.f32 %v1751, %v1866
    %v2008 = vadd.f32 %v1752, %v1866
    %v2009 = vadd.f32 %v1753, %v1866
    %v2010 = vadd.f32 %v1754, %v1871
    %v2011 = vadd.f32 %v1755, %v1871
    %v2012 = vadd.f32 %v1756, %v1871
    %v2013 = vadd.f32 %v1757, %v1876
    %v2014 = vadd.f32 %v1758, %v1876
    %v2015 = vadd.f32 %v1759, %v1876
    %v2016 = vadd.f32 %v1760, %v1881
    %v2017 = vadd.f32 %v1761, %v1881
    %v2018 = vadd.f32 %v1762, %v1881
    %v2019 = vadd.f32 %v1763, %v1886
    %v2020 = vadd.f32 %v1764, %v1886
    %v2021 = vadd.f32 %v1765, %v1886
    %v2022 = vadd.f32 %v1766, %v1891
    %v2023 = vadd.f32 %v1767, %v1891
    %v2024 = vadd.f32 %v1768, %v1891
    %v2025 = vadd.f32 %v1769, %v1896
    %v2026 = vadd.f32 %v1770, %v1896
    %v2027 = vadd.f32 %v1771, %v1896
    %v2028 = vadd.f32 %v1772, %v1901
    %v2029 = vadd.f32 %v1773, %v1901
    %v2030 = vadd.f32 %v1774, %v1901
    %v2031 = vadd.f32 %v1775, %v1906
    %v2032 = vadd.f32 %v1776, %v1906
    %v2033 = vadd.f32 %v1777, %v1906
    %v2034 = vadd.f32 %v1778, %v1911
    %v2035 = vadd.f32 %v1779, %v1911
    %v2036 = vadd.f32 %v1780, %v1911
    %v2037 = vadd.f32 %v1781, %v1916
    %v2038 = vadd.f32 %v1782, %v1916
    %v2039 = vadd.f32 %v1783, %v1916
    %v2040 = vadd.f32 %v1784, %v1921
    %v2041 = vadd.f32 %v1785, %v1921
    %v2042 = vadd.f32 %v1786, %v1921
    %v2043 = vadd.f32 %v1787, %v1926
    %v2044 = vadd.f32 %v1788, %v1926
    %v2045 = vadd.f32 %v1789, %v1926
    %v2046 = vadd.f32 %v1790, %v1931
    %v2047 = vadd.f32 %v1791, %v1931
    %v2048 = vadd.f32 %v1792, %v1931
    %v2049 = vadd.f32 %v1793, %v1936
    %v2050 = vadd.f32 %v1794, %v1936
    %v2051 = vadd.f32 %v1795, %v1936
    %v2052 = vadd.f32 %v1796, %v1941
    %v2053 = vadd.f32 %v1797, %v1941
    %v2054 = vadd.f32 %v1798, %v1941
    %v2055 = vadd.f32 %v1799, %v1946
    %v2056 = vadd.f32 %v1800, %v1946
    %v2057 = vadd.f32 %v1801, %v1946
    %v2058 = vadd.f32 %v1802, %v1951
    %v2059 = vadd.f32 %v1803, %v1951
    %v2060 = vadd.f32 %v1804, %v1951
    %v2061 = vadd.f32 %v1805, %v1956
    %v2062 = vadd.f32 %v1806, %v1956
    %v2063 = vadd.f32 %v1807, %v1956
    %v2064 = vadd.f32 %v1808, %v1961
    %v2065 = vadd.f32 %v1809, %v1961
    %v2066 = vadd.f32 %v1810, %v1961
    %v2067 = vadd.f32 %v1811, %v1966
    %v2068 = vadd.f32 %v1812, %v1966
    %v2069 = vadd.f32 %v1813, %v1966
    %v2070 = vadd.f32 %v1814, %v1971
    %v2071 = vadd.f32 %v1815, %v1971
    %v2072 = vadd.f32 %v1816, %v1971
    %v2073 = vadd.f32 %v1817, %v1976
    %v2074 = vadd.f32 %v1818, %v1976
    %v2075 = vadd.f32 %v1819, %v1976
    %v2076 = vadd.f32 %v1820, %v1981
    %v2077 = vadd.f32 %v1821, %v1981
    %v2078 = vadd.f32 %v1822, %v1981
    %v2079 = vmul.f32 %v1983, 0.2
    %v2080 = vmul.f32 %v1984, 0.2
    %v2081 = vmul.f32 %v1985, 0.2
    %v2082 = vmul.f32 %v1986, 0.2
    %v2083 = vmul.f32 %v1987, 0.2
    %v2084 = vmul.f32 %v1988, 0.2
    %v2085 = vmul.f32 %v1989, 0.2
    %v2086 = vmul.f32 %v1990, 0.2
    %v2087 = vmul.f32 %v1991, 0.2
    %v2088 = vmul.f32 %v1992, 0.2
    %v2089 = vmul.f32 %v1993, 0.2
    %v2090 = vmul.f32 %v1994, 0.2
    %v2091 = vmul.f32 %v1995, 0.2
    %v2092 = vmul.f32 %v1996, 0.2
    %v2093 = vmul.f32 %v1997, 0.2
    %v2094 = vmul.f32 %v1998, 0.2
    %v2095 = vmul.f32 %v1999, 0.2
    %v2096 = vmul.f32 %v2000, 0.2
    %v2097 = vmul.f32 %v2001, 0.2
    %v2098 = vmul.f32 %v2002, 0.2
    %v2099 = vmul.f32 %v2003, 0.2
    %v2100 = vmul.f32 %v2004, 0.2
    %v2101 = vmul.f32 %v2005, 0.2
    %v2102 = vmul.f32 %v2006, 0.2
    %v2103 = vmul.f32 %v2007, 0.2
    %v2104 = vmul.f32 %v2008, 0.2
    %v2105 = vmul.f32 %v2009, 0.2
    %v2106 = vmul.f32 %v2010, 0.2
    %v2107 = vmul.f32 %v2011, 0.2
    %v2108 = vmul.f32 %v2012, 0.2
    %v2109 = vmul.f32 %v2013, 0.2
    %v2110 = vmul.f32 %v2014, 0.2
    %v2111 = vmul.f32 %v2015, 0.2
    %v2112 = vmul.f32 %v2016, 0.2
    %v2113 = vmul.f32 %v2017, 0.2
    %v2114 = vmul.f32 %v2018, 0.2
    %v2115 = vmul.f32 %v2019, 0.2
    %v2116 = vmul.f32 %v2020, 0.2
    %v2117 = vmul.f32 %v2021, 0.2
    %v2118 = vmul.f32 %v2022, 0.2
    %v2119 = vmul.f32 %v2023, 0.2
    %v2120 = vmul.f32 %v2024, 0.2
    %v2121 = vmul.f32 %v2025, 0.2
    %v2122 = vmul.f32 %v2026, 0.2
    %v2123 = vmul.f32 %v2027, 0.2
    %v2124 = vmul.f32 %v2028, 0.2
    %v2125 = vmul.f32 %v2029, 0.2
    %v2126 = vmul.f32 %v2030, 0.2
    %v2127 = vmul.f32 %v2031, 0.2
    %v2128 = vmul.f32 %v2032, 0.2
    %v2129 = vmul.f32 %v2033, 0.2
    %v2130 = vmul.f32 %v2034, 0.2
    %v2131 = vmul.f32 %v2035, 0.2
    %v2132 = vmul.f32 %v2036, 0.2
    %v2133 = vmul.f32 %v2037, 0.2
    %v2134 = vmul.f32 %v2038, 0.2
    %v2135 = vmul.f32 %v2039, 0.2
    %v2136 = vmul.f32 %v2040, 0.2
    %v2137 = vmul.f32 %v2041, 0.2
    %v2138 = vmul.f32 %v2042, 0.2
    %v2139 = vmul.f32 %v2043, 0.2
    %v2140 = vmul.f32 %v2044, 0.2
    %v2141 = vmul.f32 %v2045, 0.2
    %v2142 = vmul.f32 %v2046, 0.2
    %v2143 = vmul.f32 %v2047, 0.2
    %v2144 = vmul.f32 %v2048, 0.2
    %v2145 = vmul.f32 %v2049, 0.2
    %v2146 = vmul.f32 %v2050, 0.2
    %v2147 = vmul.f32 %v2051, 0.2
    %v2148 = vmul.f32 %v2052, 0.2
    %v2149 = vmul.f32 %v2053, 0.2
    %v2150 = vmul.f32 %v2054, 0.2
    %v2151 = vmul.f32 %v2055, 0.2
    %v2152 = vmul.f32 %v2056, 0.2
    %v2153 = vmul.f32 %v2057, 0.2
    %v2154 = vmul.f32 %v2058, 0.2
    %v2155 = vmul.f32 %v2059, 0.2
    %v2156 = vmul.f32 %v2060, 0.2
    %v2157 = vmul.f32 %v2061, 0.2
    %v2158 = vmul.f32 %v2062, 0.2
    %v2159 = vmul.f32 %v2063, 0.2
    %v2160 = vmul.f32 %v2064, 0.2
    %v2161 = vmul.f32 %v2065, 0.2
    %v2162 = vmul.f32 %v2066, 0.2
    %v2163 = vmul.f32 %v2067, 0.2
    %v2164 = vmul.f32 %v2068, 0.2
    %v2165 = vmul.f32 %v2069, 0.2
    %v2166 = vmul.f32 %v2070, 0.2
    %v2167 = vmul.f32 %v2071, 0.2
    %v2168 = vmul.f32 %v2072, 0.2
    %v2169 = vmul.f32 %v2073, 0.2
    %v2170 = vmul.f32 %v2074, 0.2
    %v2171 = vmul.f32 %v2075, 0.2
    %v2172 = vmul.f32 %v2076, 0.2
    %v2173 = vmul.f32 %v2077, 0.2
    %v2174 = vmul.f32 %v2078, 0.2
    %v2175 = vmax.f32 %v1983, %v2079
    %v2176 = vmax.f32 %v1984, %v2080
    %v2177 = vmax.f32 %v1985, %v2081
    %v2178 = vmax.f32 %v1986, %v2082
    %v2179 = vmax.f32 %v1987, %v2083
    %v2180 = vmax.f32 %v1988, %v2084
    %v2181 = vmax.f32 %v1989, %v2085
    %v2182 = vmax.f32 %v1990, %v2086
    %v2183 = vmax.f32 %v1991, %v2087
    %v2184 = vmax.f32 %v1992, %v2088
    %v2185 = vmax.f32 %v1993, %v2089
    %v2186 = vmax.f32 %v1994, %v2090
    %v2187 = vmax.f32 %v1995, %v2091
    %v2188 = vmax.f32 %v1996, %v2092
    %v2189 = vmax.f32 %v1997, %v2093
    %v2190 = vmax.f32 %v1998, %v2094
    %v2191 = vmax.f32 %v1999, %v2095
    %v2192 = vmax.f32 %v2000, %v2096
    %v2193 = vmax.f32 %v2001, %v2097
    %v2194 = vmax.f32 %v2002, %v2098
    %v2195 = vmax.f32 %v2003, %v2099
    %v2196 = vmax.f32 %v2004, %v2100
    %v2197 = vmax.f32 %v2005, %v2101
    %v2198 = vmax.f32 %v2006, %v2102
    %v2199 = vmax.f32 %v2007, %v2103
    %v2200 = vmax.f32 %v2008, %v2104
    %v2201 = vmax.f32 %v2009, %v2105
    %v2202 = vmax.f32 %v2010, %v2106
    %v2203 = vmax.f32 %v2011, %v2107
    %v2204 = vmax.f32 %v2012, %v2108
    %v2205 = vmax.f32 %v2013, %v2109
    %v2206 = vmax.f32 %v2014, %v2110
    %v2207 = vmax.f32 %v2015, %v2111
    %v2208 = vmax.f32 %v2016, %v2112
    %v2209 = vmax.f32 %v2017, %v2113
    %v2210 = vmax.f32 %v2018, %v2114
    %v2211 = vmax.f32 %v2019, %v2115
    %v2212 = vmax.f32 %v2020, %v2116
    %v2213 = vmax.f32 %v2021, %v2117
    %v2214 = vmax.f32 %v2022, %v2118
    %v2215 = vmax.f32 %v2023, %v2119
    %v2216 = vmax.f32 %v2024, %v2120
    %v2217 = vmax.f32 %v2025, %v2121
    %v2218 = vmax.f32 %v2026, %v2122
    %v2219 = vmax.f32 %v2027, %v2123
    %v2220 = vmax.f32 %v2028, %v2124
    %v2221 = vmax.f32 %v2029, %v2125
    %v2222 = vmax.f32 %v2030, %v2126
    %v2223 = vmax.f32 %v2031, %v2127
    %v2224 = vmax.f32 %v2032, %v2128
    %v2225 = vmax.f32 %v2033, %v2129
    %v2226 = vmax.f32 %v2034, %v2130
    %v2227 = vmax.f32 %v2035, %v2131
    %v2228 = vmax.f32 %v2036, %v2132
    %v2229 = vmax.f32 %v2037, %v2133
    %v2230 = vmax.f32 %v2038, %v2134
    %v2231 = vmax.f32 %v2039, %v2135
    %v2232 = vmax.f32 %v2040, %v2136
    %v2233 = vmax.f32 %v2041, %v2137
    %v2234 = vmax.f32 %v2042, %v2138
    %v2235 = vmax.f32 %v2043, %v2139
    %v2236 = vmax.f32 %v2044, %v2140
    %v2237 = vmax.f32 %v2045, %v2141
    %v2238 = vmax.f32 %v2046, %v2142
    %v2239 = vmax.f32 %v2047, %v2143
    %v2240 = vmax.f32 %v2048, %v2144
    %v2241 = vmax.f32 %v2049, %v2145
    %v2242 = vmax.f32 %v2050, %v2146
    %v2243 = vmax.f32 %v2051, %v2147
    %v2244 = vmax.f32 %v2052, %v2148
    %v2245 = vmax.f32 %v2053, %v2149
    %v2246 = vmax.f32 %v2054, %v2150
    %v2247 = vmax.f32 %v2055, %v2151
    %v2248 = vmax.f32 %v2056, %v2152
    %v2249 = vmax.f32 %v2057, %v2153
    %v2250 = vmax.f32 %v2058, %v2154
    %v2251 = vmax.f32 %v2059, %v2155
    %v2252 = vmax.f32 %v2060, %v2156
    %v2253 = vmax.f32 %v2061, %v2157
    %v2254 = vmax.f32 %v2062, %v2158
    %v2255 = vmax.f32 %v2063, %v2159
    %v2256 = vmax.f32 %v2064, %v2160
    %v2257 = vmax.f32 %v2065, %v2161
    %v2258 = vmax.f32 %v2066, %v2162
    %v2259 = vmax.f32 %v2067, %v2163
    %v2260 = vmax.f32 %v2068, %v2164
    %v2261 = vmax.f32 %v2069, %v2165
    %v2262 = vmax.f32 %v2070, %v2166
    %v2263 = vmax.f32 %v2071, %v2167
    %v2264 = vmax.f32 %v2072, %v2168
    %v2265 = vmax.f32 %v2073, %v2169
    %v2266 = vmax.f32 %v2074, %v2170
    %v2267 = vmax.f32 %v2075, %v2171
    %v2268 = vmax.f32 %v2076, %v2172
    %v2269 = vmax.f32 %v2077, %v2173
    %v2270 = vmax.f32 %v2078, %v2174
    %v2271 = vld [vmem:[%s4] sm:$0x3]
    %s2272 = sld [smem:[#allocation3]]
    %v2273 = vstv %s2272
    %v2275 = vlaneseq
    %v2276 = vshrl.u32 %v2275, 7
    %v2277 = vsub.s32 0, %v2276
    %v2278 = vrot.slane %v2271, %v2277
    %v2279 = vlaneseq
    %v2280 = vshrl.u32 %v2279, 7
    %v2281 = vsub.s32 1, %v2280
    %v2282 = vrot.slane %v2271, %v2281
    %2285 = vmatprep.subr.mxu0 %v2221
    %2286 = vmatpush1.msra.mxu0 %v2220
    %2287 = vmatprep.subr.mxu0 %v2218
    %2288 = vmatpush1.msra.mxu0 %v2217
    %2289 = vmatprep.subr.mxu0 %v2215
    %2290 = vmatpush1.msra.mxu0 %v2214
    %2291 = vmatprep.subr.mxu0 %v2212
    %2292 = vmatpush1.msra.mxu0 %v2211
    %2293 = vmatprep.subr.mxu0 %v2209
    %2294 = vmatpush1.msra.mxu0 %v2208
    %2295 = vmatprep.subr.mxu0 %v2206
    %2296 = vmatpush1.msra.mxu0 %v2205
    %2297 = vmatprep.subr.mxu0 %v2203
    %2298 = vmatpush1.msra.mxu0 %v2202
    %2299 = vmatprep.subr.mxu0 %v2200
    %2300 = vmatpush1.msra.mxu0 %v2199
    %2301 = vmatprep.subr.mxu0 %v2197
    %2302 = vmatpush1.msra.mxu0 %v2196
    %2303 = vmatprep.subr.mxu0 %v2194
    %2304 = vmatpush1.msra.mxu0 %v2193
    %2305 = vmatprep.subr.mxu0 %v2191
    %2306 = vmatpush1.msra.mxu0 %v2190
    %2307 = vmatprep.subr.mxu0 %v2188
    %2308 = vmatpush1.msra.mxu0 %v2187
    %2309 = vmatprep.subr.mxu0 %v2185
    %2310 = vmatpush1.msra.mxu0 %v2184
    %2311 = vmatprep.subr.mxu0 %v2182
    %2312 = vmatpush1.msra.mxu0 %v2181
    %2313 = vmatprep.subr.mxu0 %v2179
    %2314 = vmatpush1.msra.mxu0 %v2178
    %2315 = vmatprep.subr.mxu0 %v2176
    %2316 = vmatpush1.msra.mxu0 %v2175
    %2317 = vmatprep.subr.mxu0 %v2269
    %2318 = vmatpush2.msra.mxu0 %v2268
    %2319 = vmatprep.subr.mxu0 %v2266
    %2320 = vmatpush2.msra.mxu0 %v2265
    %2321 = vmatprep.subr.mxu0 %v2263
    %2322 = vmatpush2.msra.mxu0 %v2262
    %2323 = vmatprep.subr.mxu0 %v2260
    %2324 = vmatpush2.msra.mxu0 %v2259
    %2325 = vmatprep.subr.mxu0 %v2257
    %2326 = vmatpush2.msra.mxu0 %v2256
    %2327 = vmatprep.subr.mxu0 %v2254
    %2328 = vmatpush2.msra.mxu0 %v2253
    %2329 = vmatprep.subr.mxu0 %v2251
    %2330 = vmatpush2.msra.mxu0 %v2250
    %2331 = vmatprep.subr.mxu0 %v2248
    %2332 = vmatpush2.msra.mxu0 %v2247
    %2333 = vmatprep.subr.mxu0 %v2245
    %2334 = vmatpush2.msra.mxu0 %v2244
    %2335 = vmatprep.subr.mxu0 %v2242
    %2336 = vmatpush2.msra.mxu0 %v2241
    %2337 = vmatprep.subr.mxu0 %v2239
    %2338 = vmatpush2.msra.mxu0 %v2238
    %2339 = vmatprep.subr.mxu0 %v2236
    %2340 = vmatpush2.msra.mxu0 %v2235
    %2341 = vmatprep.subr.mxu0 %v2233
    %2342 = vmatpush2.msra.mxu0 %v2232
    %2343 = vmatprep.subr.mxu0 %v2230
    %2344 = vmatpush2.msra.mxu0 %v2229
    %2345 = vmatprep.subr.mxu0 %v2227
    %2346 = vmatpush2.msra.mxu0 %v2226
    %2347 = vmatprep.subr.mxu0 %v2224
    %2348 = vmatpush2.msra.mxu0 %v2223
    %2349 = vmatprep.mubr.f32.mxu0 %v2282
    %2350 = vmatmul.mubr.f32.gmra.mxu0 %v2278
    %v2351 = vpop.f32.mrf.mxu0
    %v2352 = vadd.f32 %v2273, %v2351
    %v2353 = vpop.f32.mrf.mxu0
    %v2354 = vadd.f32 %v2273, %v2353
    %2355 = vdwg.mxu0
    %2356 = vmatprep.subr.mxu0 0.0
    %2357 = vmatpush1.msra.mxu0 %v2222
    %2358 = vmatprep.subr.mxu0 0.0
    %2359 = vmatpush1.msra.mxu0 %v2219
    %2360 = vmatprep.subr.mxu0 0.0
    %2361 = vmatpush1.msra.mxu0 %v2216
    %2362 = vmatprep.subr.mxu0 0.0
    %2363 = vmatpush1.msra.mxu0 %v2213
    %2364 = vmatprep.subr.mxu0 0.0
    %2365 = vmatpush1.msra.mxu0 %v2210
    %2366 = vmatprep.subr.mxu0 0.0
    %2367 = vmatpush1.msra.mxu0 %v2207
    %2368 = vmatprep.subr.mxu0 0.0
    %2369 = vmatpush1.msra.mxu0 %v2204
    %2370 = vmatprep.subr.mxu0 0.0
    %2371 = vmatpush1.msra.mxu0 %v2201
    %2372 = vmatprep.subr.mxu0 0.0
    %2373 = vmatpush1.msra.mxu0 %v2198
    %2374 = vmatprep.subr.mxu0 0.0
    %2375 = vmatpush1.msra.mxu0 %v2195
    %2376 = vmatprep.subr.mxu0 0.0
    %2377 = vmatpush1.msra.mxu0 %v2192
    %2378 = vmatprep.subr.mxu0 0.0
    %2379 = vmatpush1.msra.mxu0 %v2189
    %2380 = vmatprep.subr.mxu0 0.0
    %2381 = vmatpush1.msra.mxu0 %v2186
    %2382 = vmatprep.subr.mxu0 0.0
    %2383 = vmatpush1.msra.mxu0 %v2183
    %2384 = vmatprep.subr.mxu0 0.0
    %2385 = vmatpush1.msra.mxu0 %v2180
    %2386 = vmatprep.subr.mxu0 0.0
    %2387 = vmatpush1.msra.mxu0 %v2177
    %2388 = vmatprep.subr.mxu0 0.0
    %2389 = vmatpush2.msra.mxu0 %v2270
    %2390 = vmatprep.subr.mxu0 0.0
    %2391 = vmatpush2.msra.mxu0 %v2267
    %2392 = vmatprep.subr.mxu0 0.0
    %2393 = vmatpush2.msra.mxu0 %v2264
    %2394 = vmatprep.subr.mxu0 0.0
    %2395 = vmatpush2.msra.mxu0 %v2261
    %2396 = vmatprep.subr.mxu0 0.0
    %2397 = vmatpush2.msra.mxu0 %v2258
    %2398 = vmatprep.subr.mxu0 0.0
    %2399 = vmatpush2.msra.mxu0 %v2255
    %2400 = vmatprep.subr.mxu0 0.0
    %2401 = vmatpush2.msra.mxu0 %v2252
    %2402 = vmatprep.subr.mxu0 0.0
    %2403 = vmatpush2.msra.mxu0 %v2249
    %2404 = vmatprep.subr.mxu0 0.0
    %2405 = vmatpush2.msra.mxu0 %v2246
    %2406 = vmatprep.subr.mxu0 0.0
    %2407 = vmatpush2.msra.mxu0 %v2243
    %2408 = vmatprep.subr.mxu0 0.0
    %2409 = vmatpush2.msra.mxu0 %v2240
    %2410 = vmatprep.subr.mxu0 0.0
    %2411 = vmatpush2.msra.mxu0 %v2237
    %2412 = vmatprep.subr.mxu0 0.0
    %2413 = vmatpush2.msra.mxu0 %v2234
    %2414 = vmatprep.subr.mxu0 0.0
    %2415 = vmatpush2.msra.mxu0 %v2231
    %2416 = vmatprep.subr.mxu0 0.0
    %2417 = vmatpush2.msra.mxu0 %v2228
    %2418 = vmatprep.subr.mxu0 0.0
    %2419 = vmatpush2.msra.mxu0 %v2225
    %2420 = vmatprep.mubr.f32.mxu0 %v2282
    %2421 = vmatmul.mubr.f32.gmra.mxu0 %v2278
    %v2422 = vpop.f32.mrf.mxu0
    %v2423 = vadd.f32 %v2273, %v2422
    %v2424 = vpop.f32.mrf.mxu0
    %2425 = vdwg.mxu0
    %v2429 = vcombine.low %v2352, %v2354
    %v2431 = vunpack.c.l.s4 1966171168
    %v2432 = vunpack.c.0.s8 %v2431
    %v2433 = vlaneseq
    %v2434 = vshrl.u32 %v2433, 7
    %v2435 = vsub.s32 %v2432, %v2434
    %v2436 = vrot.slane %v2429, %v2435
    %v2438 = vunpack.c.l.s4 1966171168
    %v2439 = vunpack.c.0.s8 %v2438
    %v2440 = vlaneseq
    %v2441 = vshrl.u32 %v2440, 7
    %v2442 = vsub.s32 %v2439, %v2441
    %v2443 = vrot.slane %v2423, %v2442
    %v2444 = vcombine.low %v2436, %v2443
    %v2446 = vunpack.c.l.s4 1966171168
    %v2447 = vunpack.c.0.s8 %v2446
    %v2448 = vlaneseq
    %v2449 = vshrl.u32 %v2448, 7
    %v2450 = vsub.s32 %v2447, %v2449
    %v2451 = vrot.slane %v2444, %v2450
    %v2453 = vlaneseq
    %vm2454 = vcmp.ge.s32.totalorder %v2453, 0
    %vm2455 = vcmp.lt.s32.totalorder %v2453, 384
    %vm2456 = vmand %vm2454, %vm2455
    %2457 = vst.msk [vmem:[#allocation4] sm:$0x7] %vm2456, %v2451
    // Predicated region
    $region26: #{tpu_custom_call.1} parent=1 // pred_check
      _
    $region27: #{tpu_custom_call.1} parent=1 // pred_check_branch
      %2459 = sbr.rel (0) target = $region29
    $region28: #{tpu_custom_call.1} parent=1 // pred_region
      %s2461 = ssub.s32 48, 48
      %2462 = vsyncadd [#allocation5], %s2461
      %s2464 = sshll.u32 [#allocation4], 4
      %s2465 = int_to_ptr.vmem [resolvable:$true] %s2464
      %2467 = dma.vmem_to_hbm [thread:$0]  %s2465, 48, %s6, [#allocation5]
    $region29: #{tpu_custom_call.1} parent=1 // pred_fallthru
      _
    // Predicated region
    $region30: #{tpu_custom_call.1} parent=1 // pred_check
      _
    $region31: #{tpu_custom_call.1} parent=1 // pred_check_branch
      %2469 = sbr.rel (0) target = $region33
    $region32: #{tpu_custom_call.1} parent=1 // pred_region
      %2470 = dma.done [#allocation5], 48
    $region33: #{tpu_custom_call.1} parent=1 // pred_fallthru
      _
    %2471 = vsyncpa [#allocation5], 1

</llo_original>
